<compile_context>
chip_gen: v5e
topology: v5e:2x2
jax: 0.10.0
libtpu: 0.0.40
codegen_flags: <defaults>
</compile_context>

<pallas_src>
import math

import jax
import jax.numpy as jnp
from jax.experimental import pallas as pl
from jax.experimental.pallas import tpu as pltpu


LN_EPS = 1e-5  # nn.LayerNorm default eps


def _round_up(x, m):
    return ((x + m - 1) // m) * m


def _leaky_relu(h, slope=0.1):
    return jnp.where(h > 0, h, slope * h)


def _layer_norm_onepass(h, gamma, beta):
    # var = E[x^2] - E[x]^2 : one elementwise pass + two XLU reductions.
    n = h.shape[-1]
    inv_n = 1.0 / n
    mu = jnp.sum(h, axis=-1, keepdims=True) * inv_n
    ms = jnp.sum(h * h, axis=-1, keepdims=True) * inv_n
    var = jnp.maximum(ms - mu * mu, 0.0)
    return (h - mu) * jax.lax.rsqrt(var + LN_EPS) * gamma + beta


# ---------------------------------------------------------------------------
# Kernel
# ---------------------------------------------------------------------------
def actor_kernel(x_ref, w1_ref, w2_ref, wh_ref, vec_ref, out_ref):
    hidden = w2_ref.shape[0]
    a2 = out_ref.shape[-1]          # 2 * action_dim
    a = a2 // 2

    x = x_ref[...].astype(jnp.float32)
    vecs = vec_ref[...].astype(jnp.float32)

    # Packed per-layer vectors: rows [b1, g1, be1, b2, g2, be2, head_bias, 0]
    b1, g1, be1 = vecs[0:1, :hidden], vecs[1:2, :hidden], vecs[2:3, :hidden]
    b2, g2, be2 = vecs[3:4, :hidden], vecs[4:5, :hidden], vecs[5:6, :hidden]
    bh = vecs[6:7, :a2]

    # ---- block 1: Linear -> LeakyReLU(0.1) -> LayerNorm ----
    h = jnp.dot(x, w1_ref[...], preferred_element_type=jnp.float32) + b1
    h = _leaky_relu(h)
    h = _layer_norm_onepass(h, g1, be1)

    # ---- block 2: Linear -> LeakyReLU(0.1) -> LayerNorm ----
    h = jnp.dot(h, w2_ref[...], preferred_element_type=jnp.float32) + b2
    h = _leaky_relu(h)
    h = _layer_norm_onepass(h, g2, be2)

    # ---- fused heads: [mean | log_std] in one matmul / one output slab ----
    out = jnp.dot(h, wh_ref[...], preferred_element_type=jnp.float32) + bh

    # clamp only the log_std columns (lane-dense select, no narrow slicing)
    col = jax.lax.broadcasted_iota(jnp.int32, out.shape, dimension=1)
    out = jnp.where(col >= a, jnp.clip(out, -20.0, 2.0), out)

    out_ref[...] = out.astype(out_ref.dtype)


# ---------------------------------------------------------------------------
# Wrapper
# ---------------------------------------------------------------------------
def actor_forward(state, packed, *, block_rows=256):
    """Run the Actor forward pass as one Pallas call, tiled over the batch.

    `block_rows` is the batch tile (multiple of 8). Weights stay resident in
    VMEM across all batch blocks; input/output batch blocks are pipelined.
    """
    w1, w2, wh, vecs = packed["w1"], packed["w2"], packed["wh"], packed["vecs"]
    B, state_dim = state.shape
    hidden = w2.shape[0]
    a2 = wh.shape[1]
    action_dim = a2 // 2
    vw = vecs.shape[1]

    assert block_rows % 8 == 0, "block_rows must be a multiple of 8"

    # Batch tile: full (rounded) batch if it is small, else block_rows.
    tb = block_rows if B > block_rows else _round_up(max(B, 1), 8)
    bp = _round_up(B, tb)
    if bp != B:
        state = jnp.pad(state, ((0, bp - B), (0, 0)))

    grid = (bp // tb,)
    vmem = pltpu.MemorySpace.VMEM

    out = pl.pallas_call(
        actor_kernel,
        out_shape=jax.ShapeDtypeStruct((bp, a2), jnp.float32),
        grid=grid,
        in_specs=[
            # batch-tiled activation input
            pl.BlockSpec((tb, state_dim), lambda i: (i, 0), memory_space=vmem),
            # parameters: whole-array blocks, resident across all batch blocks
            pl.BlockSpec((state_dim, hidden), lambda i: (0, 0), memory_space=vmem),
            pl.BlockSpec((hidden, hidden), lambda i: (0, 0), memory_space=vmem),
            pl.BlockSpec((hidden, a2), lambda i: (0, 0), memory_space=vmem),
            pl.BlockSpec((8, vw), lambda i: (0, 0), memory_space=vmem),
        ],
        out_specs=pl.BlockSpec((tb, a2), lambda i: (i, 0), memory_space=vmem),
        compiler_params=pltpu.CompilerParams(
            dimension_semantics=("parallel",),
            vmem_limit_bytes=32 << 20,
        ),
    )(state, w1, w2, wh, vecs)

    mean = out[:B, :action_dim]
    log_std = out[:B, action_dim:]
    return mean, log_std


# ---------------------------------------------------------------------------
# Parameter initialization (mimics orthogonal_(gain=sqrt(2)), bias = 0,
# LayerNorm weight = 1, bias = 0) and packing into the kernel layout.
# ---------------------------------------------------------------------------
def _orthogonal(key, out_features, in_features, gain):
    rows, cols = out_features, in_features
    a = jax.random.normal(key, (max(rows, cols), min(rows, cols)), jnp.float32)
    q, r = jnp.linalg.qr(a)
    q = q * jnp.sign(jnp.diagonal(r))[None, :]
    if rows < cols:
        q = q.T
    w = gain * q[:rows, :cols]          # PyTorch layout: (out, in)
    return w.T                          # kernel layout:  (in, out)


def init_actor_params(key, state_dim, action_dim, hidden_dim):
    gain = math.sqrt(2.0)
    k1, k2, k3, k4 = jax.random.split(key, 4)
    return {
        "w1": _orthogonal(k1, hidden_dim, state_dim, gain),
        "b1": jnp.zeros((hidden_dim,), jnp.float32),
        "g1": jnp.ones((hidden_dim,), jnp.float32),
        "be1": jnp.zeros((hidden_dim,), jnp.float32),
        "w2": _orthogonal(k2, hidden_dim, hidden_dim, gain),
        "b2": jnp.zeros((hidden_dim,), jnp.float32),
        "g2": jnp.ones((hidden_dim,), jnp.float32),
        "be2": jnp.zeros((hidden_dim,), jnp.float32),
        "wm": _orthogonal(k3, action_dim, hidden_dim, gain),
        "bm": jnp.zeros((action_dim,), jnp.float32),
        "ws": _orthogonal(k4, action_dim, hidden_dim, gain),
        "bs": jnp.zeros((action_dim,), jnp.float32),
    }


def pack_actor_params(p):
    """Pack logical params into the kernel layout:
       w1 (S,H), w2 (H,H), wh (H,2A) = [Wm|Ws], vecs (8, max(H,2A))."""
    hidden = p["w2"].shape[0]
    action_dim = p["wm"].shape[1]
    a2 = 2 * action_dim
    vw = max(hidden, a2)

    vecs = jnp.zeros((8, vw), jnp.float32)
    vecs = vecs.at[0, :hidden].set(p["b1"])
    vecs = vecs.at[1, :hidden].set(p["g1"])
    vecs = vecs.at[2, :hidden].set(p["be1"])
    vecs = vecs.at[3, :hidden].set(p["b2"])
    vecs = vecs.at[4, :hidden].set(p["g2"])
    vecs = vecs.at[5, :hidden].set(p["be2"])
    vecs = vecs.at[6, :a2].set(jnp.concatenate([p["bm"], p["bs"]]))

    wh = jnp.concatenate([p["wm"], p["ws"]], axis=1)
    return {"w1": p["w1"], "w2": p["w2"], "wh": wh, "vecs": vecs}


# ---------------------------------------------------------------------------
# Pure-JAX reference (matches PyTorch LayerNorm formulation exactly).
# ---------------------------------------------------------------------------
def _layer_norm_ref(h, gamma, beta):
    mu = jnp.mean(h, axis=-1, keepdims=True)
    var = jnp.mean((h - mu) ** 2, axis=-1, keepdims=True)
    return (h - mu) * jax.lax.rsqrt(var + LN_EPS) * gamma + beta


def actor_ref(state, p):
    h = state @ p["w1"] + p["b1"]
    h = jnp.where(h > 0, h, 0.1 * h)
    h = _layer_norm_ref(h, p["g1"], p["be1"])
    h = h @ p["w2"] + p["b2"]
    h = jnp.where(h > 0, h, 0.1 * h)
    h = _layer_norm_ref(h, p["g2"], p["be2"])
    mean = h @ p["wm"] + p["bm"]
    log_std = jnp.clip(h @ p["ws"] + p["bs"], -20.0, 2.0)
    return mean, log_std


if __name__ == "__main__":
    batch = 200          # deliberately NOT a multiple of the batch tile
    state_dim = 16
    action_dim = 4
    hidden_dim = 256     # module default; keeps the 128-lane axis full

    key = jax.random.PRNGKey(0)
    k_state, k_params = jax.random.split(key)
    state = jax.random.normal(k_state, (batch, state_dim), jnp.float32)

    logical = init_actor_params(k_params, state_dim, action_dim, hidden_dim)
    packed = pack_actor_params(logical)

    # block_rows=128 -> grid of 2 batch blocks (with padding) to exercise the
    # pipelined / parallel batch axis even at this small test size.
    mean, log_std = jax.block_until_ready(
        actor_forward(state, packed, block_rows=128))

    mean_r, log_std_r = actor_ref(state, logical)

    assert mean.shape == (batch, action_dim)
    assert log_std.shape == (batch, action_dim)
    assert jnp.allclose(mean, mean_r, atol=1e-3, rtol=1e-3)
    assert jnp.allclose(log_std, log_std_r, atol=1e-3, rtol=1e-3)

    print("KERNEL_OK")
</pallas_src>

<mosaic_0001>
module attributes {stable_mosaic.version = 11 : i64} {
  func.func @actor_kernel(%arg0: i32, %arg1: memref<128x16xf32, #tpu.memory_space<vmem>>, %arg2: memref<16x256xf32, #tpu.memory_space<vmem>>, %arg3: memref<256x256xf32, #tpu.memory_space<vmem>>, %arg4: memref<256x8xf32, #tpu.memory_space<vmem>>, %arg5: memref<8x256xf32, #tpu.memory_space<vmem>>, %arg6: memref<128x8xf32, #tpu.memory_space<vmem>>) attributes {dimension_semantics = [#tpu.dimension_semantics<parallel>], iteration_bounds = array<i64: 2>, scalar_prefetch = 0 : i64, scratch_operands = 0 : i64, tpu.core_type = #tpu.core_type<tc>, window_params = [{transform_indices = @transform_0, window_bounds = array<i64: 128, 16>}, {pipeline_mode = #tpu.pipeline_mode<synchronous>, transform_indices = @transform_1, window_bounds = array<i64: 16, 256>}, {pipeline_mode = #tpu.pipeline_mode<synchronous>, transform_indices = @transform_2, window_bounds = array<i64: 256, 256>}, {pipeline_mode = #tpu.pipeline_mode<synchronous>, transform_indices = @transform_3, window_bounds = array<i64: 256, 8>}, {pipeline_mode = #tpu.pipeline_mode<synchronous>, transform_indices = @transform_4, window_bounds = array<i64: 8, 256>}, {transform_indices = @transform_5, window_bounds = array<i64: 128, 8>}]} {
    %c0 = arith.constant 0 : index
    %c0_0 = arith.constant 0 : index
    %0 = vector.load %arg1[%c0, %c0_0] : memref<128x16xf32, #tpu.memory_space<vmem>>, vector<128x16xf32>
    %c0_1 = arith.constant 0 : index
    %c0_2 = arith.constant 0 : index
    %1 = vector.load %arg5[%c0_1, %c0_2] : memref<8x256xf32, #tpu.memory_space<vmem>>, vector<8x256xf32>
    %2 = vector.extract_strided_slice %1 {offsets = [0, 0], sizes = [1, 256], strides = [1, 1]} : vector<8x256xf32> to vector<1x256xf32>
    %3 = vector.extract_strided_slice %1 {offsets = [1, 0], sizes = [1, 256], strides = [1, 1]} : vector<8x256xf32> to vector<1x256xf32>
    %4 = vector.extract_strided_slice %1 {offsets = [2, 0], sizes = [1, 256], strides = [1, 1]} : vector<8x256xf32> to vector<1x256xf32>
    %5 = vector.extract_strided_slice %1 {offsets = [3, 0], sizes = [1, 256], strides = [1, 1]} : vector<8x256xf32> to vector<1x256xf32>
    %6 = vector.extract_strided_slice %1 {offsets = [4, 0], sizes = [1, 256], strides = [1, 1]} : vector<8x256xf32> to vector<1x256xf32>
    %7 = vector.extract_strided_slice %1 {offsets = [5, 0], sizes = [1, 256], strides = [1, 1]} : vector<8x256xf32> to vector<1x256xf32>
    %8 = vector.extract_strided_slice %1 {offsets = [6, 0], sizes = [1, 8], strides = [1, 1]} : vector<8x256xf32> to vector<1x8xf32>
    %c0_3 = arith.constant 0 : index
    %c0_4 = arith.constant 0 : index
    %9 = vector.load %arg2[%c0_3, %c0_4] : memref<16x256xf32, #tpu.memory_space<vmem>>, vector<16x256xf32>
    %cst = arith.constant dense<0.000000e+00> : vector<128x256xf32>
    %10 = tpu.matmul %0, %9, %cst {dimension_numbers = #tpu.dot_dimension_numbers<[1], [0], [0], [1], [0, 0, 1, 1], [], []>} : vector<128x16xf32>, vector<16x256xf32>, vector<128x256xf32> -> vector<128x256xf32>
    %11 = vector.broadcast %2 : vector<1x256xf32> to vector<128x256xf32>
    %12 = arith.addf %10, %11 : vector<128x256xf32>
    %cst_5 = arith.constant 0.000000e+00 : f32
    %13 = vector.broadcast %cst_5 : f32 to vector<128x256xf32>
    %14 = arith.cmpf ogt, %12, %13 : vector<128x256xf32>
    %cst_6 = arith.constant 1.000000e-01 : f32
    %15 = vector.broadcast %cst_6 : f32 to vector<128x256xf32>
    %16 = arith.mulf %15, %12 : vector<128x256xf32>
    %17 = arith.select %14, %12, %16 : vector<128x256xi1>, vector<128x256xf32>
    %cst_7 = arith.constant dense<0.000000e+00> : vector<128xf32>
    %18 = vector.multi_reduction <add>, %17, %cst_7 [1] : vector<128x256xf32> to vector<128xf32>
    %19 = vector.shape_cast %18 : vector<128xf32> to vector<128x1xf32>
    %cst_8 = arith.constant 3.906250e-03 : f32
    %20 = vector.broadcast %cst_8 : f32 to vector<128x1xf32>
    %21 = arith.mulf %19, %20 : vector<128x1xf32>
    %22 = arith.mulf %17, %17 : vector<128x256xf32>
    %cst_9 = arith.constant dense<0.000000e+00> : vector<128xf32>
    %23 = vector.multi_reduction <add>, %22, %cst_9 [1] : vector<128x256xf32> to vector<128xf32>
    %24 = vector.shape_cast %23 : vector<128xf32> to vector<128x1xf32>
    %cst_10 = arith.constant 3.906250e-03 : f32
    %25 = vector.broadcast %cst_10 : f32 to vector<128x1xf32>
    %26 = arith.mulf %24, %25 : vector<128x1xf32>
    %27 = arith.mulf %21, %21 : vector<128x1xf32>
    %28 = arith.subf %26, %27 : vector<128x1xf32>
    %cst_11 = arith.constant 0.000000e+00 : f32
    %29 = vector.broadcast %cst_11 : f32 to vector<128x1xf32>
    %30 = arith.maximumf %28, %29 : vector<128x1xf32>
    %31 = vector.broadcast %21 : vector<128x1xf32> to vector<128x256xf32>
    %32 = arith.subf %17, %31 : vector<128x256xf32>
    %cst_12 = arith.constant 9.99999974E-6 : f32
    %33 = vector.broadcast %cst_12 : f32 to vector<128x1xf32>
    %34 = arith.addf %30, %33 : vector<128x1xf32>
    %35 = math.rsqrt %34 : vector<128x1xf32>
    %36 = vector.broadcast %35 : vector<128x1xf32> to vector<128x256xf32>
    %37 = arith.mulf %32, %36 : vector<128x256xf32>
    %38 = vector.broadcast %3 : vector<1x256xf32> to vector<128x256xf32>
    %39 = arith.mulf %37, %38 : vector<128x256xf32>
    %40 = vector.broadcast %4 : vector<1x256xf32> to vector<128x256xf32>
    %41 = arith.addf %39, %40 : vector<128x256xf32>
    %c0_13 = arith.constant 0 : index
    %c0_14 = arith.constant 0 : index
    %42 = vector.load %arg3[%c0_13, %c0_14] : memref<256x256xf32, #tpu.memory_space<vmem>>, vector<256x256xf32>
    %cst_15 = arith.constant dense<0.000000e+00> : vector<128x256xf32>
    %43 = tpu.matmul %41, %42, %cst_15 {dimension_numbers = #tpu.dot_dimension_numbers<[1], [0], [0], [1], [0, 0, 1, 1], [], []>} : vector<128x256xf32>, vector<256x256xf32>, vector<128x256xf32> -> vector<128x256xf32>
    %44 = vector.broadcast %5 : vector<1x256xf32> to vector<128x256xf32>
    %45 = arith.addf %43, %44 : vector<128x256xf32>
    %cst_16 = arith.constant 0.000000e+00 : f32
    %46 = vector.broadcast %cst_16 : f32 to vector<128x256xf32>
    %47 = arith.cmpf ogt, %45, %46 : vector<128x256xf32>
    %cst_17 = arith.constant 1.000000e-01 : f32
    %48 = vector.broadcast %cst_17 : f32 to vector<128x256xf32>
    %49 = arith.mulf %48, %45 : vector<128x256xf32>
    %50 = arith.select %47, %45, %49 : vector<128x256xi1>, vector<128x256xf32>
    %cst_18 = arith.constant dense<0.000000e+00> : vector<128xf32>
    %51 = vector.multi_reduction <add>, %50, %cst_18 [1] : vector<128x256xf32> to vector<128xf32>
    %52 = vector.shape_cast %51 : vector<128xf32> to vector<128x1xf32>
    %cst_19 = arith.constant 3.906250e-03 : f32
    %53 = vector.broadcast %cst_19 : f32 to vector<128x1xf32>
    %54 = arith.mulf %52, %53 : vector<128x1xf32>
    %55 = arith.mulf %50, %50 : vector<128x256xf32>
    %cst_20 = arith.constant dense<0.000000e+00> : vector<128xf32>
    %56 = vector.multi_reduction <add>, %55, %cst_20 [1] : vector<128x256xf32> to vector<128xf32>
    %57 = vector.shape_cast %56 : vector<128xf32> to vector<128x1xf32>
    %cst_21 = arith.constant 3.906250e-03 : f32
    %58 = vector.broadcast %cst_21 : f32 to vector<128x1xf32>
    %59 = arith.mulf %57, %58 : vector<128x1xf32>
    %60 = arith.mulf %54, %54 : vector<128x1xf32>
    %61 = arith.subf %59, %60 : vector<128x1xf32>
    %cst_22 = arith.constant 0.000000e+00 : f32
    %62 = vector.broadcast %cst_22 : f32 to vector<128x1xf32>
    %63 = arith.maximumf %61, %62 : vector<128x1xf32>
    %64 = vector.broadcast %54 : vector<128x1xf32> to vector<128x256xf32>
    %65 = arith.subf %50, %64 : vector<128x256xf32>
    %cst_23 = arith.constant 9.99999974E-6 : f32
    %66 = vector.broadcast %cst_23 : f32 to vector<128x1xf32>
    %67 = arith.addf %63, %66 : vector<128x1xf32>
    %68 = math.rsqrt %67 : vector<128x1xf32>
    %69 = vector.broadcast %68 : vector<128x1xf32> to vector<128x256xf32>
    %70 = arith.mulf %65, %69 : vector<128x256xf32>
    %71 = vector.broadcast %6 : vector<1x256xf32> to vector<128x256xf32>
    %72 = arith.mulf %70, %71 : vector<128x256xf32>
    %73 = vector.broadcast %7 : vector<1x256xf32> to vector<128x256xf32>
    %74 = arith.addf %72, %73 : vector<128x256xf32>
    %c0_24 = arith.constant 0 : index
    %c0_25 = arith.constant 0 : index
    %75 = vector.load %arg4[%c0_24, %c0_25] : memref<256x8xf32, #tpu.memory_space<vmem>>, vector<256x8xf32>
    %cst_26 = arith.constant dense<0.000000e+00> : vector<128x8xf32>
    %76 = tpu.matmul %74, %75, %cst_26 {dimension_numbers = #tpu.dot_dimension_numbers<[1], [0], [0], [1], [0, 0, 1, 1], [], []>} : vector<128x256xf32>, vector<256x8xf32>, vector<128x8xf32> -> vector<128x8xf32>
    %77 = vector.broadcast %8 : vector<1x8xf32> to vector<128x8xf32>
    %78 = arith.addf %76, %77 : vector<128x8xf32>
    %79 = tpu.iota {dimensions = array<i32: 1>} : vector<128x8xi32>
    %c4_i32 = arith.constant 4 : i32
    %80 = vector.broadcast %c4_i32 : i32 to vector<128x8xi32>
    %81 = arith.cmpi sge, %79, %80 : vector<128x8xi32>
    %cst_27 = arith.constant -2.000000e+01 : f32
    %cst_28 = arith.constant 2.000000e+00 : f32
    %82 = vector.broadcast %cst_27 : f32 to vector<128x8xf32>
    %83 = arith.maximumf %82, %78 : vector<128x8xf32>
    %84 = vector.broadcast %cst_28 : f32 to vector<128x8xf32>
    %85 = arith.minimumf %84, %83 : vector<128x8xf32>
    %86 = arith.select %81, %85, %78 : vector<128x8xi1>, vector<128x8xf32>
    %c0_29 = arith.constant 0 : index
    %c0_30 = arith.constant 0 : index
    %87 = vector.load %arg6[%c0_29, %c0_30] : memref<128x8xf32, #tpu.memory_space<vmem>>, vector<128x8xf32>
    tpu.vector_store %arg6[%c0_29, %c0_30], %86 {strides = array<i32>} : memref<128x8xf32, #tpu.memory_space<vmem>>, vector<128x8xf32>,
    return
  }
  func.func @transform_0(%arg0: i32) -> (i32, i32) {
    %c0_i32 = arith.constant 0 : i32
    %c0_i32_0 = arith.constant 0 : i32
    return %arg0, %c0_i32 : i32, i32
  }
  func.func @transform_1(%arg0: i32) -> (i32, i32) {
    %c0_i32 = arith.constant 0 : i32
    %c0_i32_0 = arith.constant 0 : i32
    %c0_i32_1 = arith.constant 0 : i32
    return %c0_i32, %c0_i32_0 : i32, i32
  }
  func.func @transform_2(%arg0: i32) -> (i32, i32) {
    %c0_i32 = arith.constant 0 : i32
    %c0_i32_0 = arith.constant 0 : i32
    %c0_i32_1 = arith.constant 0 : i32
    return %c0_i32, %c0_i32_0 : i32, i32
  }
  func.func @transform_3(%arg0: i32) -> (i32, i32) {
    %c0_i32 = arith.constant 0 : i32
    %c0_i32_0 = arith.constant 0 : i32
    %c0_i32_1 = arith.constant 0 : i32
    return %c0_i32, %c0_i32_0 : i32, i32
  }
  func.func @transform_4(%arg0: i32) -> (i32, i32) {
    %c0_i32 = arith.constant 0 : i32
    %c0_i32_0 = arith.constant 0 : i32
    %c0_i32_1 = arith.constant 0 : i32
    return %c0_i32, %c0_i32_0 : i32, i32
  }
  func.func @transform_5(%arg0: i32) -> (i32, i32) {
    %c0_i32 = arith.constant 0 : i32
    %c0_i32_0 = arith.constant 0 : i32
    return %arg0, %c0_i32 : i32, i32
  }
}

</mosaic_0001>

<llo_original>
// kernel: tpu_custom_call.1
$region0: #{tpu_custom_call.1}
  #allocation0 [shape = 'u32[]', space=smem, size = 0x4, offset = 0x4, fixed_abs, tag = 'smem constant byte address 0x4 - core index']
  #allocation1 [shape = 'u32[72,128]{1,0:T(1,128)}', space=vmem, size = 0x9000, scoped, tag = 'internal scratch']
  %s0 = inlined_call_operand.vmem [shape: f32[256,16], index: 0, kind: input, shape index: {}]
  %s1 = inlined_call_operand.vmem [shape: f32[16,256], index: 1, kind: input, shape index: {}]
  %s2 = inlined_call_operand.vmem [shape: f32[256,256], index: 2, kind: input, shape index: {}]
  %s3 = inlined_call_operand.vmem [shape: f32[256,8], index: 3, kind: input, shape index: {}]
  %s4 = inlined_call_operand.hbm [shape: f32[8,256], index: 4, kind: input, shape index: {}]
  %s5 = inlined_call_operand.vmem [shape: f32[256,8], index: 5, kind: output, shape index: {}]
  %s6 = sld [smem:[#allocation0]]
  $region57: #{tpu_custom_call.1} parent=0
    _
  %s8 = ssub.s32 1, %s6
  %s9 = scalar_select 0, %s8, %s6
  $region1: #{tpu_custom_call.1} parent=0
    #allocation2 [shape = 'u8[8192]{0}', space=vmem, size = 0x2000, scoped, tag = 'input window, operand 4, single buffered']
    #allocation3 [shape = 's32[2]{0}', space=sflag, size = 0x8, scoped, tag = 'scoped memory for tpu_custom_call.1']
    %10 = vsyncpa [#allocation3], 0
    loop: start=0, step=1, limit=4
    $region2: #{tpu_custom_call.1} parent=1 // loop_pre_header
      _
    $region3: #{tpu_custom_call.1} parent=1 // loop_header
      %s12 = sphi 0, %s16
      %p13 = scmp.ge.s32.totalorder %s12, 4
      %s22 = sphi 0, %s24
      %s25 = sphi 0, %s22
      %s26 = sphi 0, %s25
      %s42 = sphi 0, %s26
      %s46 = sphi 0, %s46
      %s48 = sphi 0, %s46
      %s49 = sphi 0, %s48
      %s63 = sphi 0, %s49
      %s67 = sphi 0, %s67
      %s69 = sphi 0, %s67
      %s70 = sphi 0, %s69
      %s84 = sphi 0, %s70
      %s88 = sphi 0, %s88
      %s90 = sphi 0, %s88
      %s91 = sphi 0, %s90
      %s105 = sphi 0, %s91
      %s109 = sphi 0, %s109
      %s111 = sphi 0, %s109
      %s112 = sphi 0, %s111
      %s126 = sphi 0, %s112
      %s132 = sphi 0, %s134
      %s135 = sphi 0, %s132
      %s136 = sphi 0, %s135
      %s152 = sphi 0, %s136
    $region4: #{tpu_custom_call.1} parent=1 // loop_header_branch
      %15 = sbr.rel (%p13) target = $region8
    $region5: #{tpu_custom_call.1} parent=1 // loop_body
      %s17 = ssub.s32 %s12, 1
      %s18 = ssub.s32 %s12, 2
      %s19 = sadd.s32 %s12, 1
      %s20 = ssub.s32 %s12, %s19
      %p21 = scmp.eq.s32.totalorder %s20, 0
      %s23 = sadd.s32 %s22, 1
      %s24 = scalar_select %p21, %s22, %s23
      %p27 = pneg %p21
      %p28 = scmp.eq.s32.totalorder %s12, 1
      %p29 = por %p27, %p28
      %p30 = scmp.ne.s32.totalorder %s22, %s25
      %p31 = scmp.eq.s32.totalorder %s12, 0
      %p32 = por %p30, %p31
      %p33 = scmp.ne.s32.totalorder %s22, %s25
      %p34 = scmp.eq.s32.totalorder %s17, 1
      %p35 = por %p33, %p34
      %p36 = scmp.ne.s32.totalorder %s25, %s26
      %p37 = scmp.eq.s32.totalorder %s17, 0
      %p38 = por %p36, %p37
      %p39 = scmp.ne.s32.totalorder %s25, %s26
      %p40 = scmp.eq.s32.totalorder %s18, 1
      %p41 = por %p39, %p40
      %p43 = scmp.ne.s32.totalorder %s26, %s42
      %p44 = scmp.eq.s32.totalorder %s18, 0
      %p45 = por %p43, %p44
      %s47 = sadd.s32 %s46, 1
      %p50 = scmp.eq.s32.totalorder %s12, 1
      %p51 = scmp.ne.s32.totalorder %s46, %s48
      %p52 = scmp.eq.s32.totalorder %s12, 0
      %p53 = por %p51, %p52
      %p54 = scmp.ne.s32.totalorder %s46, %s48
      %p55 = scmp.eq.s32.totalorder %s17, 1
      %p56 = por %p54, %p55
      %p57 = scmp.ne.s32.totalorder %s48, %s49
      %p58 = scmp.eq.s32.totalorder %s17, 0
      %p59 = por %p57, %p58
      %p60 = scmp.ne.s32.totalorder %s48, %s49
      %p61 = scmp.eq.s32.totalorder %s18, 1
      %p62 = por %p60, %p61
      %p64 = scmp.ne.s32.totalorder %s49, %s63
      %p65 = scmp.eq.s32.totalorder %s18, 0
      %p66 = por %p64, %p65
      %s68 = sadd.s32 %s67, 1
      %p71 = scmp.eq.s32.totalorder %s12, 1
      %p72 = scmp.ne.s32.totalorder %s67, %s69
      %p73 = scmp.eq.s32.totalorder %s12, 0
      %p74 = por %p72, %p73
      %p75 = scmp.ne.s32.totalorder %s67, %s69
      %p76 = scmp.eq.s32.totalorder %s17, 1
      %p77 = por %p75, %p76
      %p78 = scmp.ne.s32.totalorder %s69, %s70
      %p79 = scmp.eq.s32.totalorder %s17, 0
      %p80 = por %p78, %p79
      %p81 = scmp.ne.s32.totalorder %s69, %s70
      %p82 = scmp.eq.s32.totalorder %s18, 1
      %p83 = por %p81, %p82
      %p85 = scmp.ne.s32.totalorder %s70, %s84
      %p86 = scmp.eq.s32.totalorder %s18, 0
      %p87 = por %p85, %p86
      %s89 = sadd.s32 %s88, 1
      %p92 = scmp.eq.s32.totalorder %s12, 1
      %p93 = scmp.ne.s32.totalorder %s88, %s90
      %p94 = scmp.eq.s32.totalorder %s12, 0
      %p95 = por %p93, %p94
      %p96 = scmp.ne.s32.totalorder %s88, %s90
      %p97 = scmp.eq.s32.totalorder %s17, 1
      %p98 = por %p96, %p97
      %p99 = scmp.ne.s32.totalorder %s90, %s91
      %p100 = scmp.eq.s32.totalorder %s17, 0
      %p101 = por %p99, %p100
      %p102 = scmp.ne.s32.totalorder %s90, %s91
      %p103 = scmp.eq.s32.totalorder %s18, 1
      %p104 = por %p102, %p103
      %p106 = scmp.ne.s32.totalorder %s91, %s105
      %p107 = scmp.eq.s32.totalorder %s18, 0
      %p108 = por %p106, %p107
      %s110 = sadd.s32 %s109, 1
      %p113 = scmp.eq.s32.totalorder %s12, 1
      %p114 = scmp.ne.s32.totalorder %s109, %s111
      %p115 = scmp.eq.s32.totalorder %s12, 0
      %p116 = por %p114, %p115
      %p117 = scmp.ne.s32.totalorder %s109, %s111
      %p118 = scmp.eq.s32.totalorder %s17, 1
      %p119 = por %p117, %p118
      %p120 = scmp.ne.s32.totalorder %s111, %s112
      %p121 = scmp.eq.s32.totalorder %s17, 0
      %p122 = por %p120, %p121
      %p123 = scmp.ne.s32.totalorder %s111, %s112
      %p124 = scmp.eq.s32.totalorder %s18, 1
      %p125 = por %p123, %p124
      %p127 = scmp.ne.s32.totalorder %s112, %s126
      %p128 = scmp.eq.s32.totalorder %s18, 0
      %p129 = por %p127, %p128
      %s130 = ssub.s32 %s12, %s19
      %p131 = scmp.eq.s32.totalorder %s130, 0
      %s133 = sadd.s32 %s132, 1
      %s134 = scalar_select %p131, %s132, %s133
      %p137 = pneg %p131
      %p138 = scmp.eq.s32.totalorder %s12, 1
      %p139 = por %p137, %p138
      %p140 = scmp.ne.s32.totalorder %s132, %s135
      %p141 = scmp.eq.s32.totalorder %s12, 0
      %p142 = por %p140, %p141
      %p143 = scmp.ne.s32.totalorder %s132, %s135
      %p144 = scmp.eq.s32.totalorder %s17, 1
      %p145 = por %p143, %p144
      %p146 = scmp.ne.s32.totalorder %s135, %s136
      %p147 = scmp.eq.s32.totalorder %s17, 0
      %p148 = por %p146, %p147
      %p149 = scmp.ne.s32.totalorder %s135, %s136
      %p150 = scmp.eq.s32.totalorder %s18, 1
      %p151 = por %p149, %p150
      %p153 = scmp.ne.s32.totalorder %s136, %s152
      %p154 = scmp.eq.s32.totalorder %s18, 0
      %p155 = por %p153, %p154
      %p156 = scmp.le.s32.totalorder 1, %s12
      %p157 = scmp.lt.s32.totalorder %s12, 3
      %p158 = pnand %p156, %p157
      %p159 = pneg %p158
      // Predicated region
      $region9: #{tpu_custom_call.1} parent=5 // pred_check
        _
      $region10: #{tpu_custom_call.1} parent=5 // pred_check_branch
        %161 = sbr.rel (%p158) target = $region12
      $region11: #{tpu_custom_call.1} parent=5 // pred_region
        %s162 = ssub.s32 %s12, 1
        // Predicated region
        $region13: #{tpu_custom_call.1} parent=11 // pred_check
          %p163 = pneg %p59
        $region14: #{tpu_custom_call.1} parent=11 // pred_check_branch
          %165 = sbr.rel (%p163) target = $region16
        $region15: #{tpu_custom_call.1} parent=11 // pred_region
          _
        $region16: #{tpu_custom_call.1} parent=11 // pred_fallthru
          _
        // Predicated region
        $region17: #{tpu_custom_call.1} parent=11 // pred_check
          %p166 = pneg %p80
        $region18: #{tpu_custom_call.1} parent=11 // pred_check_branch
          %168 = sbr.rel (%p166) target = $region20
        $region19: #{tpu_custom_call.1} parent=11 // pred_region
          _
        $region20: #{tpu_custom_call.1} parent=11 // pred_fallthru
          _
        // Predicated region
        $region21: #{tpu_custom_call.1} parent=11 // pred_check
          %p169 = pneg %p101
        $region22: #{tpu_custom_call.1} parent=11 // pred_check_branch
          %171 = sbr.rel (%p169) target = $region24
        $region23: #{tpu_custom_call.1} parent=11 // pred_region
          _
        $region24: #{tpu_custom_call.1} parent=11 // pred_fallthru
          _
        // Predicated region
        $region25: #{tpu_custom_call.1} parent=11 // pred_check
          %p172 = pneg %p122
        $region26: #{tpu_custom_call.1} parent=11 // pred_check_branch
          %174 = sbr.rel (%p172) target = $region28
        $region27: #{tpu_custom_call.1} parent=11 // pred_region
          %176 = vsyncadd [#allocation3], 0
          %s178 = sshll.u32 %s4, 4
          %s179 = int_to_ptr.hbm [resolvable:$true] %s178
          %s180 = sshll.u32 [#allocation2], 4
          %s181 = int_to_ptr.vmem [resolvable:$true] %s180
          %183 = dma.hbm_to_vmem [thread:$0]  %s179, 256, %s181, [#allocation3]
        $region28: #{tpu_custom_call.1} parent=11 // pred_fallthru
          _
      $region12: #{tpu_custom_call.1} parent=5 // pred_fallthru
        _
      %p184 = scmp.lt.s32.totalorder %s12, 2
      // Predicated region
      $region29: #{tpu_custom_call.1} parent=5 // pred_check
        %p185 = pneg %p184
      $region30: #{tpu_custom_call.1} parent=5 // pred_check_branch
        %187 = sbr.rel (%p185) target = $region32
      $region31: #{tpu_custom_call.1} parent=5 // pred_region
        // Predicated region
        $region33: #{tpu_custom_call.1} parent=31 // pred_check
          %p188 = pneg %p32
        $region34: #{tpu_custom_call.1} parent=31 // pred_check_branch
          %190 = sbr.rel (%p188) target = $region36
        $region35: #{tpu_custom_call.1} parent=31 // pred_region
          %s191 = smul.u32 16, %s12
          %p192 = scmp.lt.s32.totalorder %s191, 31
          %s193 = scalar_select %p192, %s191, 31
          %s194 = smul.addr %s193, 8
          %s195 = scalar_lea.vmem %s0, %s194
          %s196 = smul.u32 16, %s12
        $region36: #{tpu_custom_call.1} parent=31 // pred_fallthru
          _
      $region32: #{tpu_custom_call.1} parent=5 // pred_fallthru
        _
      %p197 = scmp.le.s32.totalorder 1, %s12
      %p198 = scmp.lt.s32.totalorder %s12, 3
      %p199 = pnand %p197, %p198
      %p200 = pneg %p199
      // Predicated region
      $region37: #{tpu_custom_call.1} parent=5 // pred_check
        _
      $region38: #{tpu_custom_call.1} parent=5 // pred_check_branch
        %202 = sbr.rel (%p199) target = $region40
      $region39: #{tpu_custom_call.1} parent=5 // pred_region
        %s203 = ssub.s32 %s12, 1
        // Predicated region
        $region41: #{tpu_custom_call.1} parent=39 // pred_check
          %p204 = pneg %p122
        $region42: #{tpu_custom_call.1} parent=39 // pred_check_branch
          %206 = sbr.rel (%p204) target = $region44
        $region43: #{tpu_custom_call.1} parent=39 // pred_region
          %208 = dma.done [#allocation3], 256
        $region44: #{tpu_custom_call.1} parent=39 // pred_fallthru
          _
        %s209 = smul.u32 16, %s17
        %p210 = scmp.lt.s32.totalorder %s209, 31
        %s211 = scalar_select %p210, %s209, 31
        %s212 = smul.addr %s211, 8
        %s213 = scalar_lea.vmem %s0, %s212
        %p214 = pneg %p38
        %p215 = pneg %p35
        %p216 = pneg %p59
        %p217 = pneg %p56
        %p218 = pneg %p80
        %p219 = pneg %p77
        %p220 = pneg %p101
        %p221 = pneg %p98
        %p222 = pneg %p122
        %p223 = pneg %p119
        %p224 = pneg %p148
        %p225 = pneg %p145
        %s226 = smul.u32 16, %s17
        %p227 = scmp.lt.s32.totalorder %s226, 31
        %s228 = scalar_select %p227, %s226, 31
        %s229 = smul.addr %s228, 8
        %s230 = scalar_lea.vmem %s5, %s229
        %s231 = smul.u32 16, %s17
        %p232 = scmp.lt.s32.totalorder %s231, 31
        %s233 = scalar_select %p232, %s231, 31
        %s234 = smul.addr %s233, 8
        %s235 = scalar_lea.vmem %s0, %s234
        %s236 = smul.u32 16, %s17
        %s237 = smul.u32 16, %s17
        %p238 = scmp.lt.s32.totalorder %s237, 31
        %s239 = scalar_select %p238, %s237, 31
        %s240 = smul.addr %s239, 8
        %s241 = scalar_lea.vmem %s5, %s240
        %s242 = smul.u32 16, %s17
        %v243 = vld [vmem:[%s235] sm:$0xff]
        %v244 = vld [vmem:[%s235 + $0x8] sm:$0xff]
        %v245 = vld [vmem:[%s235 + $0x10] sm:$0xff]
        %v246 = vld [vmem:[%s235 + $0x18] sm:$0xff]
        %v247 = vld [vmem:[%s235 + $0x20] sm:$0xff]
        %v248 = vld [vmem:[%s235 + $0x28] sm:$0xff]
        %v249 = vld [vmem:[%s235 + $0x30] sm:$0xff]
        %v250 = vld [vmem:[%s235 + $0x38] sm:$0xff]
        %v251 = vld [vmem:[%s235 + $0x40] sm:$0xff]
        %v252 = vld [vmem:[%s235 + $0x48] sm:$0xff]
        %v253 = vld [vmem:[%s235 + $0x50] sm:$0xff]
        %v254 = vld [vmem:[%s235 + $0x58] sm:$0xff]
        %v255 = vld [vmem:[%s235 + $0x60] sm:$0xff]
        %v256 = vld [vmem:[%s235 + $0x68] sm:$0xff]
        %v257 = vld [vmem:[%s235 + $0x70] sm:$0xff]
        %v258 = vld [vmem:[%s235 + $0x78] sm:$0xff]
        %v259 = vld [vmem:[#allocation2] sm:$0xff]
        %v260 = vld [vmem:[#allocation2 + $0x8] sm:$0xff]
        %v261 = vld [vmem:[%s1] sm:$0xff]
        %v262 = vld [vmem:[%s1 + $0x8] sm:$0xff]
        %v263 = vld [vmem:[%s1 + $0x10] sm:$0xff]
        %v264 = vld [vmem:[%s1 + $0x18] sm:$0xff]
        %v265 = vperm.slane %v259, 0
        %v266 = vperm.slane %v260, 0
        %vm267 = vcmask 130048
        %v269 = vsel %vm267, %v243, 0
        %v272 = vsel %vm267, %v244, 0
        %v275 = vsel %vm267, %v245, 0
        %v278 = vsel %vm267, %v246, 0
        %v281 = vsel %vm267, %v247, 0
        %v284 = vsel %vm267, %v248, 0
        %v287 = vsel %vm267, %v249, 0
        %v290 = vsel %vm267, %v250, 0
        %v293 = vsel %vm267, %v251, 0
        %v296 = vsel %vm267, %v252, 0
        %v299 = vsel %vm267, %v253, 0
        %v302 = vsel %vm267, %v254, 0
        %v305 = vsel %vm267, %v255, 0
        %v308 = vsel %vm267, %v256, 0
        %v311 = vsel %vm267, %v257, 0
        %v314 = vsel %vm267, %v258, 0
        %316 = vmatpush.msra.mxu0 0.0
        %317 = vmatpush.msra.mxu0 0.0
        %318 = vmatpush.msra.mxu0 0.0
        %319 = vmatpush.msra.mxu0 0.0
        %320 = vmatpush.msra.mxu0 0.0
        %321 = vmatpush.msra.mxu0 0.0
        %322 = vmatpush.msra.mxu0 0.0
        %323 = vmatpush.msra.mxu0 0.0
        %324 = vmatpush.msra.mxu0 0.0
        %325 = vmatpush.msra.mxu0 0.0
        %326 = vmatpush.msra.mxu0 0.0
        %327 = vmatpush.msra.mxu0 0.0
        %328 = vmatpush.msra.mxu0 0.0
        %329 = vmatpush.msra.mxu0 0.0
        %330 = vmatpush.msra.mxu0 %v263
        %331 = vmatpush.msra.mxu0 %v261
        %332 = vmatmul.f32.gmra.mxu0 %v269
        %v333 = vpop.f32.mrf.mxu0
        %v334 = vadd.f32 %v265, %v333
        %335 = vmatmul.f32.gmra.mxu0 %v272
        %v336 = vpop.f32.mrf.mxu0
        %v337 = vadd.f32 %v265, %v336
        %338 = vmatmul.f32.gmra.mxu0 %v275
        %v339 = vpop.f32.mrf.mxu0
        %v340 = vadd.f32 %v265, %v339
        %341 = vmatmul.f32.gmra.mxu0 %v278
        %v342 = vpop.f32.mrf.mxu0
        %v343 = vadd.f32 %v265, %v342
        %344 = vmatmul.f32.gmra.mxu0 %v281
        %v345 = vpop.f32.mrf.mxu0
        %v346 = vadd.f32 %v265, %v345
        %347 = vmatmul.f32.gmra.mxu0 %v284
        %v348 = vpop.f32.mrf.mxu0
        %v349 = vadd.f32 %v265, %v348
        %350 = vmatmul.f32.gmra.mxu0 %v287
        %v351 = vpop.f32.mrf.mxu0
        %v352 = vadd.f32 %v265, %v351
        %353 = vmatmul.f32.gmra.mxu0 %v290
        %v354 = vpop.f32.mrf.mxu0
        %v355 = vadd.f32 %v265, %v354
        %356 = vmatmul.f32.gmra.mxu0 %v293
        %v357 = vpop.f32.mrf.mxu0
        %v358 = vadd.f32 %v265, %v357
        %359 = vmatmul.f32.gmra.mxu0 %v296
        %v360 = vpop.f32.mrf.mxu0
        %v361 = vadd.f32 %v265, %v360
        %362 = vmatmul.f32.gmra.mxu0 %v299
        %v363 = vpop.f32.mrf.mxu0
        %v364 = vadd.f32 %v265, %v363
        %365 = vmatmul.f32.gmra.mxu0 %v302
        %v366 = vpop.f32.mrf.mxu0
        %v367 = vadd.f32 %v265, %v366
        %368 = vmatmul.f32.gmra.mxu0 %v305
        %v369 = vpop.f32.mrf.mxu0
        %v370 = vadd.f32 %v265, %v369
        %371 = vmatmul.f32.gmra.mxu0 %v308
        %v372 = vpop.f32.mrf.mxu0
        %v373 = vadd.f32 %v265, %v372
        %374 = vmatmul.f32.gmra.mxu0 %v311
        %v375 = vpop.f32.mrf.mxu0
        %v376 = vadd.f32 %v265, %v375
        %377 = vmatmul.f32.gmra.mxu0 %v314
        %v378 = vpop.f32.mrf.mxu0
        %v379 = vadd.f32 %v265, %v378
        %380 = vdwg.mxu0
        %381 = vmatpush.msra.mxu0 0.0
        %382 = vmatpush.msra.mxu0 0.0
        %383 = vmatpush.msra.mxu0 0.0
        %384 = vmatpush.msra.mxu0 0.0
        %385 = vmatpush.msra.mxu0 0.0
        %386 = vmatpush.msra.mxu0 0.0
        %387 = vmatpush.msra.mxu0 0.0
        %388 = vmatpush.msra.mxu0 0.0
        %389 = vmatpush.msra.mxu0 0.0
        %390 = vmatpush.msra.mxu0 0.0
        %391 = vmatpush.msra.mxu0 0.0
        %392 = vmatpush.msra.mxu0 0.0
        %393 = vmatpush.msra.mxu0 0.0
        %394 = vmatpush.msra.mxu0 0.0
        %395 = vmatpush.msra.mxu0 %v264
        %396 = vmatpush.msra.mxu0 %v262
        %397 = vmatmul.f32.gmra.mxu0 %v269
        %v398 = vpop.f32.mrf.mxu0
        %v399 = vadd.f32 %v266, %v398
        %400 = vmatmul.f32.gmra.mxu0 %v272
        %v401 = vpop.f32.mrf.mxu0
        %v402 = vadd.f32 %v266, %v401
        %403 = vmatmul.f32.gmra.mxu0 %v275
        %v404 = vpop.f32.mrf.mxu0
        %v405 = vadd.f32 %v266, %v404
        %406 = vmatmul.f32.gmra.mxu0 %v278
        %v407 = vpop.f32.mrf.mxu0
        %v408 = vadd.f32 %v266, %v407
        %409 = vmatmul.f32.gmra.mxu0 %v281
        %v410 = vpop.f32.mrf.mxu0
        %v411 = vadd.f32 %v266, %v410
        %412 = vmatmul.f32.gmra.mxu0 %v284
        %v413 = vpop.f32.mrf.mxu0
        %v414 = vadd.f32 %v266, %v413
        %415 = vmatmul.f32.gmra.mxu0 %v287
        %v416 = vpop.f32.mrf.mxu0
        %v417 = vadd.f32 %v266, %v416
        %418 = vmatmul.f32.gmra.mxu0 %v290
        %v419 = vpop.f32.mrf.mxu0
        %v420 = vadd.f32 %v266, %v419
        %421 = vmatmul.f32.gmra.mxu0 %v293
        %v422 = vpop.f32.mrf.mxu0
        %v423 = vadd.f32 %v266, %v422
        %424 = vmatmul.f32.gmra.mxu0 %v296
        %v425 = vpop.f32.mrf.mxu0
        %v426 = vadd.f32 %v266, %v425
        %427 = vmatmul.f32.gmra.mxu0 %v299
        %v428 = vpop.f32.mrf.mxu0
        %v429 = vadd.f32 %v266, %v428
        %430 = vmatmul.f32.gmra.mxu0 %v302
        %v431 = vpop.f32.mrf.mxu0
        %v432 = vadd.f32 %v266, %v431
        %433 = vmatmul.f32.gmra.mxu0 %v305
        %v434 = vpop.f32.mrf.mxu0
        %v435 = vadd.f32 %v266, %v434
        %436 = vmatmul.f32.gmra.mxu0 %v308
        %v437 = vpop.f32.mrf.mxu0
        %v438 = vadd.f32 %v266, %v437
        %439 = vmatmul.f32.gmra.mxu0 %v311
        %v440 = vpop.f32.mrf.mxu0
        %v441 = vadd.f32 %v266, %v440
        %442 = vmatmul.f32.gmra.mxu0 %v314
        %v443 = vpop.f32.mrf.mxu0
        %v444 = vadd.f32 %v266, %v443
        %445 = vdwg.mxu0
        %vm446 = vcmp.gt.f32.partialorder %v334, 0.0
        %vm447 = vcmp.gt.f32.partialorder %v399, 0.0
        %vm448 = vcmp.gt.f32.partialorder %v337, 0.0
        %vm449 = vcmp.gt.f32.partialorder %v402, 0.0
        %vm450 = vcmp.gt.f32.partialorder %v340, 0.0
        %vm451 = vcmp.gt.f32.partialorder %v405, 0.0
        %vm452 = vcmp.gt.f32.partialorder %v343, 0.0
        %vm453 = vcmp.gt.f32.partialorder %v408, 0.0
        %vm454 = vcmp.gt.f32.partialorder %v346, 0.0
        %vm455 = vcmp.gt.f32.partialorder %v411, 0.0
        %vm456 = vcmp.gt.f32.partialorder %v349, 0.0
        %vm457 = vcmp.gt.f32.partialorder %v414, 0.0
        %vm458 = vcmp.gt.f32.partialorder %v352, 0.0
        %vm459 = vcmp.gt.f32.partialorder %v417, 0.0
        %vm460 = vcmp.gt.f32.partialorder %v355, 0.0
        %vm461 = vcmp.gt.f32.partialorder %v420, 0.0
        %vm462 = vcmp.gt.f32.partialorder %v358, 0.0
        %vm463 = vcmp.gt.f32.partialorder %v423, 0.0
        %vm464 = vcmp.gt.f32.partialorder %v361, 0.0
        %vm465 = vcmp.gt.f32.partialorder %v426, 0.0
        %vm466 = vcmp.gt.f32.partialorder %v364, 0.0
        %vm467 = vcmp.gt.f32.partialorder %v429, 0.0
        %vm468 = vcmp.gt.f32.partialorder %v367, 0.0
        %vm469 = vcmp.gt.f32.partialorder %v432, 0.0
        %vm470 = vcmp.gt.f32.partialorder %v370, 0.0
        %vm471 = vcmp.gt.f32.partialorder %v435, 0.0
        %vm472 = vcmp.gt.f32.partialorder %v373, 0.0
        %vm473 = vcmp.gt.f32.partialorder %v438, 0.0
        %vm474 = vcmp.gt.f32.partialorder %v376, 0.0
        %vm475 = vcmp.gt.f32.partialorder %v441, 0.0
        %vm476 = vcmp.gt.f32.partialorder %v379, 0.0
        %vm477 = vcmp.gt.f32.partialorder %v444, 0.0
        %v478 = vmul.f32 %v334, 0.1
        %v479 = vmul.f32 %v399, 0.1
        %v480 = vmul.f32 %v337, 0.1
        %v481 = vmul.f32 %v402, 0.1
        %v482 = vmul.f32 %v340, 0.1
        %v483 = vmul.f32 %v405, 0.1
        %v484 = vmul.f32 %v343, 0.1
        %v485 = vmul.f32 %v408, 0.1
        %v486 = vmul.f32 %v346, 0.1
        %v487 = vmul.f32 %v411, 0.1
        %v488 = vmul.f32 %v349, 0.1
        %v489 = vmul.f32 %v414, 0.1
        %v490 = vmul.f32 %v352, 0.1
        %v491 = vmul.f32 %v417, 0.1
        %v492 = vmul.f32 %v355, 0.1
        %v493 = vmul.f32 %v420, 0.1
        %v494 = vmul.f32 %v358, 0.1
        %v495 = vmul.f32 %v423, 0.1
        %v496 = vmul.f32 %v361, 0.1
        %v497 = vmul.f32 %v426, 0.1
        %v498 = vmul.f32 %v364, 0.1
        %v499 = vmul.f32 %v429, 0.1
        %v500 = vmul.f32 %v367, 0.1
        %v501 = vmul.f32 %v432, 0.1
        %v502 = vmul.f32 %v370, 0.1
        %v503 = vmul.f32 %v435, 0.1
        %v504 = vmul.f32 %v373, 0.1
        %v505 = vmul.f32 %v438, 0.1
        %v506 = vmul.f32 %v376, 0.1
        %v507 = vmul.f32 %v441, 0.1
        %v508 = vmul.f32 %v379, 0.1
        %v509 = vmul.f32 %v444, 0.1
        %v510 = vsel %vm446, %v334, %v478
        %v511 = vsel %vm447, %v399, %v479
        %v512 = vsel %vm448, %v337, %v480
        %v513 = vsel %vm449, %v402, %v481
        %v514 = vsel %vm450, %v340, %v482
        %v515 = vsel %vm451, %v405, %v483
        %v516 = vsel %vm452, %v343, %v484
        %v517 = vsel %vm453, %v408, %v485
        %v518 = vsel %vm454, %v346, %v486
        %v519 = vsel %vm455, %v411, %v487
        %v520 = vsel %vm456, %v349, %v488
        %v521 = vsel %vm457, %v414, %v489
        %v522 = vsel %vm458, %v352, %v490
        %v523 = vsel %vm459, %v417, %v491
        %v524 = vsel %vm460, %v355, %v492
        %v525 = vsel %vm461, %v420, %v493
        %v526 = vsel %vm462, %v358, %v494
        %v527 = vsel %vm463, %v423, %v495
        %v528 = vsel %vm464, %v361, %v496
        %v529 = vsel %vm465, %v426, %v497
        %v530 = vsel %vm466, %v364, %v498
        %v531 = vsel %vm467, %v429, %v499
        %v532 = vsel %vm468, %v367, %v500
        %v533 = vsel %vm469, %v432, %v501
        %v534 = vsel %vm470, %v370, %v502
        %v535 = vsel %vm471, %v435, %v503
        %v536 = vsel %vm472, %v373, %v504
        %v537 = vsel %vm473, %v438, %v505
        %v538 = vsel %vm474, %v376, %v506
        %v539 = vsel %vm475, %v441, %v507
        %v540 = vsel %vm476, %v379, %v508
        %v541 = vsel %vm477, %v444, %v509
        %v542 = vadd.f32 %v510, %v511
        %543 = vadd.xlane.f32.xlu0 %v542
        %v544 = vpop.xlane.xlu0 %543
        %v545 = vadd.f32 %v512, %v513
        %546 = vadd.xlane.f32.xlu0 %v545
        %v547 = vpop.xlane.xlu0 %546
        %v548 = vadd.f32 %v514, %v515
        %549 = vadd.xlane.f32.xlu0 %v548
        %v550 = vpop.xlane.xlu0 %549
        %v551 = vadd.f32 %v516, %v517
        %552 = vadd.xlane.f32.xlu0 %v551
        %v553 = vpop.xlane.xlu0 %552
        %v554 = vadd.f32 %v518, %v519
        %555 = vadd.xlane.f32.xlu0 %v554
        %v556 = vpop.xlane.xlu0 %555
        %v557 = vadd.f32 %v520, %v521
        %558 = vadd.xlane.f32.xlu0 %v557
        %v559 = vpop.xlane.xlu0 %558
        %v560 = vadd.f32 %v522, %v523
        %561 = vadd.xlane.f32.xlu0 %v560
        %v562 = vpop.xlane.xlu0 %561
        %v563 = vadd.f32 %v524, %v525
        %564 = vadd.xlane.f32.xlu0 %v563
        %v565 = vpop.xlane.xlu0 %564
        %v566 = vadd.f32 %v526, %v527
        %567 = vadd.xlane.f32.xlu0 %v566
        %v568 = vpop.xlane.xlu0 %567
        %v569 = vadd.f32 %v528, %v529
        %570 = vadd.xlane.f32.xlu0 %v569
        %v571 = vpop.xlane.xlu0 %570
        %v572 = vadd.f32 %v530, %v531
        %573 = vadd.xlane.f32.xlu0 %v572
        %v574 = vpop.xlane.xlu0 %573
        %v575 = vadd.f32 %v532, %v533
        %576 = vadd.xlane.f32.xlu0 %v575
        %v577 = vpop.xlane.xlu0 %576
        %v578 = vadd.f32 %v534, %v535
        %579 = vadd.xlane.f32.xlu0 %v578
        %v580 = vpop.xlane.xlu0 %579
        %v581 = vadd.f32 %v536, %v537
        %582 = vadd.xlane.f32.xlu0 %v581
        %v583 = vpop.xlane.xlu0 %582
        %v584 = vadd.f32 %v538, %v539
        %585 = vadd.xlane.f32.xlu0 %v584
        %v586 = vpop.xlane.xlu0 %585
        %v587 = vadd.f32 %v540, %v541
        %588 = vadd.xlane.f32.xlu0 %v587
        %v589 = vpop.xlane.xlu0 %588
        %v590 = vmul.f32 %v544, 0.00390625
        %v591 = vmul.f32 %v547, 0.00390625
        %v592 = vmul.f32 %v550, 0.00390625
        %v593 = vmul.f32 %v553, 0.00390625
        %v594 = vmul.f32 %v556, 0.00390625
        %v595 = vmul.f32 %v559, 0.00390625
        %v596 = vmul.f32 %v562, 0.00390625
        %v597 = vmul.f32 %v565, 0.00390625
        %v598 = vmul.f32 %v568, 0.00390625
        %v599 = vmul.f32 %v571, 0.00390625
        %v600 = vmul.f32 %v574, 0.00390625
        %v601 = vmul.f32 %v577, 0.00390625
        %v602 = vmul.f32 %v580, 0.00390625
        %v603 = vmul.f32 %v583, 0.00390625
        %v604 = vmul.f32 %v586, 0.00390625
        %v605 = vmul.f32 %v589, 0.00390625
        %v606 = vmul.f32 %v510, %v510
        %v607 = vmul.f32 %v511, %v511
        %v608 = vmul.f32 %v512, %v512
        %v609 = vmul.f32 %v513, %v513
        %v610 = vmul.f32 %v514, %v514
        %v611 = vmul.f32 %v515, %v515
        %v612 = vmul.f32 %v516, %v516
        %v613 = vmul.f32 %v517, %v517
        %v614 = vmul.f32 %v518, %v518
        %v615 = vmul.f32 %v519, %v519
        %v616 = vmul.f32 %v520, %v520
        %v617 = vmul.f32 %v521, %v521
        %v618 = vmul.f32 %v522, %v522
        %v619 = vmul.f32 %v523, %v523
        %v620 = vmul.f32 %v524, %v524
        %v621 = vmul.f32 %v525, %v525
        %v622 = vmul.f32 %v526, %v526
        %v623 = vmul.f32 %v527, %v527
        %v624 = vmul.f32 %v528, %v528
        %v625 = vmul.f32 %v529, %v529
        %v626 = vmul.f32 %v530, %v530
        %v627 = vmul.f32 %v531, %v531
        %v628 = vmul.f32 %v532, %v532
        %v629 = vmul.f32 %v533, %v533
        %v630 = vmul.f32 %v534, %v534
        %v631 = vmul.f32 %v535, %v535
        %v632 = vmul.f32 %v536, %v536
        %v633 = vmul.f32 %v537, %v537
        %v634 = vmul.f32 %v538, %v538
        %v635 = vmul.f32 %v539, %v539
        %v636 = vmul.f32 %v540, %v540
        %v637 = vmul.f32 %v541, %v541
        %v638 = vadd.f32 %v606, %v607
        %639 = vadd.xlane.f32.xlu0 %v638
        %v640 = vpop.xlane.xlu0 %639
        %v641 = vadd.f32 %v608, %v609
        %642 = vadd.xlane.f32.xlu0 %v641
        %v643 = vpop.xlane.xlu0 %642
        %v644 = vadd.f32 %v610, %v611
        %645 = vadd.xlane.f32.xlu0 %v644
        %v646 = vpop.xlane.xlu0 %645
        %v647 = vadd.f32 %v612, %v613
        %648 = vadd.xlane.f32.xlu0 %v647
        %v649 = vpop.xlane.xlu0 %648
        %v650 = vadd.f32 %v614, %v615
        %651 = vadd.xlane.f32.xlu0 %v650
        %v652 = vpop.xlane.xlu0 %651
        %v653 = vadd.f32 %v616, %v617
        %654 = vadd.xlane.f32.xlu0 %v653
        %v655 = vpop.xlane.xlu0 %654
        %v656 = vadd.f32 %v618, %v619
        %657 = vadd.xlane.f32.xlu0 %v656
        %v658 = vpop.xlane.xlu0 %657
        %v659 = vadd.f32 %v620, %v621
        %660 = vadd.xlane.f32.xlu0 %v659
        %v661 = vpop.xlane.xlu0 %660
        %v662 = vadd.f32 %v622, %v623
        %663 = vadd.xlane.f32.xlu0 %v662
        %v664 = vpop.xlane.xlu0 %663
        %v665 = vadd.f32 %v624, %v625
        %666 = vadd.xlane.f32.xlu0 %v665
        %v667 = vpop.xlane.xlu0 %666
        %v668 = vadd.f32 %v626, %v627
        %669 = vadd.xlane.f32.xlu0 %v668
        %v670 = vpop.xlane.xlu0 %669
        %v671 = vadd.f32 %v628, %v629
        %672 = vadd.xlane.f32.xlu0 %v671
        %v673 = vpop.xlane.xlu0 %672
        %v674 = vadd.f32 %v630, %v631
        %675 = vadd.xlane.f32.xlu0 %v674
        %v676 = vpop.xlane.xlu0 %675
        %v677 = vadd.f32 %v632, %v633
        %678 = vadd.xlane.f32.xlu0 %v677
        %v679 = vpop.xlane.xlu0 %678
        %v680 = vadd.f32 %v634, %v635
        %681 = vadd.xlane.f32.xlu0 %v680
        %v682 = vpop.xlane.xlu0 %681
        %v683 = vadd.f32 %v636, %v637
        %684 = vadd.xlane.f32.xlu0 %v683
        %v685 = vpop.xlane.xlu0 %684
        %v686 = vmul.f32 %v640, 0.00390625
        %v687 = vmul.f32 %v643, 0.00390625
        %v688 = vmul.f32 %v646, 0.00390625
        %v689 = vmul.f32 %v649, 0.00390625
        %v690 = vmul.f32 %v652, 0.00390625
        %v691 = vmul.f32 %v655, 0.00390625
        %v692 = vmul.f32 %v658, 0.00390625
        %v693 = vmul.f32 %v661, 0.00390625
        %v694 = vmul.f32 %v664, 0.00390625
        %v695 = vmul.f32 %v667, 0.00390625
        %v696 = vmul.f32 %v670, 0.00390625
        %v697 = vmul.f32 %v673, 0.00390625
        %v698 = vmul.f32 %v676, 0.00390625
        %v699 = vmul.f32 %v679, 0.00390625
        %v700 = vmul.f32 %v682, 0.00390625
        %v701 = vmul.f32 %v685, 0.00390625
        %v702 = vmul.f32 %v590, %v590
        %v703 = vmul.f32 %v591, %v591
        %v704 = vmul.f32 %v592, %v592
        %v705 = vmul.f32 %v593, %v593
        %v706 = vmul.f32 %v594, %v594
        %v707 = vmul.f32 %v595, %v595
        %v708 = vmul.f32 %v596, %v596
        %v709 = vmul.f32 %v597, %v597
        %v710 = vmul.f32 %v598, %v598
        %v711 = vmul.f32 %v599, %v599
        %v712 = vmul.f32 %v600, %v600
        %v713 = vmul.f32 %v601, %v601
        %v714 = vmul.f32 %v602, %v602
        %v715 = vmul.f32 %v603, %v603
        %v716 = vmul.f32 %v604, %v604
        %v717 = vmul.f32 %v605, %v605
        %v718 = vsub.f32 %v686, %v702
        %v719 = vsub.f32 %v687, %v703
        %v720 = vsub.f32 %v688, %v704
        %v721 = vsub.f32 %v689, %v705
        %v722 = vsub.f32 %v690, %v706
        %v723 = vsub.f32 %v691, %v707
        %v724 = vsub.f32 %v692, %v708
        %v725 = vsub.f32 %v693, %v709
        %v726 = vsub.f32 %v694, %v710
        %v727 = vsub.f32 %v695, %v711
        %v728 = vsub.f32 %v696, %v712
        %v729 = vsub.f32 %v697, %v713
        %v730 = vsub.f32 %v698, %v714
        %v731 = vsub.f32 %v699, %v715
        %v732 = vsub.f32 %v700, %v716
        %v733 = vsub.f32 %v701, %v717
        %v734 = vmax.f32 %v718, 0.0
        %v735 = vmax.f32 %v719, 0.0
        %v736 = vmax.f32 %v720, 0.0
        %v737 = vmax.f32 %v721, 0.0
        %v738 = vmax.f32 %v722, 0.0
        %v739 = vmax.f32 %v723, 0.0
        %v740 = vmax.f32 %v724, 0.0
        %v741 = vmax.f32 %v725, 0.0
        %v742 = vmax.f32 %v726, 0.0
        %v743 = vmax.f32 %v727, 0.0
        %v744 = vmax.f32 %v728, 0.0
        %v745 = vmax.f32 %v729, 0.0
        %v746 = vmax.f32 %v730, 0.0
        %v747 = vmax.f32 %v731, 0.0
        %v748 = vmax.f32 %v732, 0.0
        %v749 = vmax.f32 %v733, 0.0
        %v750 = vsub.f32 %v510, %v590
        %v751 = vsub.f32 %v511, %v590
        %v752 = vsub.f32 %v512, %v591
        %v753 = vsub.f32 %v513, %v591
        %v754 = vsub.f32 %v514, %v592
        %v755 = vsub.f32 %v515, %v592
        %v756 = vsub.f32 %v516, %v593
        %v757 = vsub.f32 %v517, %v593
        %v758 = vsub.f32 %v518, %v594
        %v759 = vsub.f32 %v519, %v594
        %v760 = vsub.f32 %v520, %v595
        %v761 = vsub.f32 %v521, %v595
        %v762 = vsub.f32 %v522, %v596
        %v763 = vsub.f32 %v523, %v596
        %v764 = vsub.f32 %v524, %v597
        %v765 = vsub.f32 %v525, %v597
        %v766 = vsub.f32 %v526, %v598
        %v767 = vsub.f32 %v527, %v598
        %v768 = vsub.f32 %v528, %v599
        %v769 = vsub.f32 %v529, %v599
        %v770 = vsub.f32 %v530, %v600
        %v771 = vsub.f32 %v531, %v600
        %v772 = vsub.f32 %v532, %v601
        %v773 = vsub.f32 %v533, %v601
        %v774 = vsub.f32 %v534, %v602
        %v775 = vsub.f32 %v535, %v602
        %v776 = vsub.f32 %v536, %v603
        %v777 = vsub.f32 %v537, %v603
        %v778 = vsub.f32 %v538, %v604
        %v779 = vsub.f32 %v539, %v604
        %v780 = vsub.f32 %v540, %v605
        %v781 = vsub.f32 %v541, %v605
        %v782 = vadd.f32 %v734, 1e-05
        %v783 = vadd.f32 %v735, 1e-05
        %v784 = vadd.f32 %v736, 1e-05
        %v785 = vadd.f32 %v737, 1e-05
        %v786 = vadd.f32 %v738, 1e-05
        %v787 = vadd.f32 %v739, 1e-05
        %v788 = vadd.f32 %v740, 1e-05
        %v789 = vadd.f32 %v741, 1e-05
        %v790 = vadd.f32 %v742, 1e-05
        %v791 = vadd.f32 %v743, 1e-05
        %v792 = vadd.f32 %v744, 1e-05
        %v793 = vadd.f32 %v745, 1e-05
        %v794 = vadd.f32 %v746, 1e-05
        %v795 = vadd.f32 %v747, 1e-05
        %v796 = vadd.f32 %v748, 1e-05
        %v797 = vadd.f32 %v749, 1e-05
        %v798 = vrsqrt.pop %v782
        %v799 = vmul.f32 %v798, %v782
        %v800 = vmul.f32 %v799, %v798
        %v801 = vmul.f32 0.5, %v800
        %v802 = vsub.f32 1.5, %v801
        %v803 = vmul.f32 %v798, %v802
        %vm804 = vweird.f32 %v782
        %vm805 = vweird.f32 %v798
        %vm806 = vmor %vm804, %vm805
        %v807 = vsel %vm806, %v798, %v803
        %v808 = vrsqrt.pop %v783
        %v809 = vmul.f32 %v808, %v783
        %v810 = vmul.f32 %v809, %v808
        %v811 = vmul.f32 0.5, %v810
        %v812 = vsub.f32 1.5, %v811
        %v813 = vmul.f32 %v808, %v812
        %vm814 = vweird.f32 %v783
        %vm815 = vweird.f32 %v808
        %vm816 = vmor %vm814, %vm815
        %v817 = vsel %vm816, %v808, %v813
        %v818 = vrsqrt.pop %v784
        %v819 = vmul.f32 %v818, %v784
        %v820 = vmul.f32 %v819, %v818
        %v821 = vmul.f32 0.5, %v820
        %v822 = vsub.f32 1.5, %v821
        %v823 = vmul.f32 %v818, %v822
        %vm824 = vweird.f32 %v784
        %vm825 = vweird.f32 %v818
        %vm826 = vmor %vm824, %vm825
        %v827 = vsel %vm826, %v818, %v823
        %v828 = vrsqrt.pop %v785
        %v829 = vmul.f32 %v828, %v785
        %v830 = vmul.f32 %v829, %v828
        %v831 = vmul.f32 0.5, %v830
        %v832 = vsub.f32 1.5, %v831
        %v833 = vmul.f32 %v828, %v832
        %vm834 = vweird.f32 %v785
        %vm835 = vweird.f32 %v828
        %vm836 = vmor %vm834, %vm835
        %v837 = vsel %vm836, %v828, %v833
        %v838 = vrsqrt.pop %v786
        %v839 = vmul.f32 %v838, %v786
        %v840 = vmul.f32 %v839, %v838
        %v841 = vmul.f32 0.5, %v840
        %v842 = vsub.f32 1.5, %v841
        %v843 = vmul.f32 %v838, %v842
        %vm844 = vweird.f32 %v786
        %vm845 = vweird.f32 %v838
        %vm846 = vmor %vm844, %vm845
        %v847 = vsel %vm846, %v838, %v843
        %v848 = vrsqrt.pop %v787
        %v849 = vmul.f32 %v848, %v787
        %v850 = vmul.f32 %v849, %v848
        %v851 = vmul.f32 0.5, %v850
        %v852 = vsub.f32 1.5, %v851
        %v853 = vmul.f32 %v848, %v852
        %vm854 = vweird.f32 %v787
        %vm855 = vweird.f32 %v848
        %vm856 = vmor %vm854, %vm855
        %v857 = vsel %vm856, %v848, %v853
        %v858 = vrsqrt.pop %v788
        %v859 = vmul.f32 %v858, %v788
        %v860 = vmul.f32 %v859, %v858
        %v861 = vmul.f32 0.5, %v860
        %v862 = vsub.f32 1.5, %v861
        %v863 = vmul.f32 %v858, %v862
        %vm864 = vweird.f32 %v788
        %vm865 = vweird.f32 %v858
        %vm866 = vmor %vm864, %vm865
        %v867 = vsel %vm866, %v858, %v863
        %v868 = vrsqrt.pop %v789
        %v869 = vmul.f32 %v868, %v789
        %v870 = vmul.f32 %v869, %v868
        %v871 = vmul.f32 0.5, %v870
        %v872 = vsub.f32 1.5, %v871
        %v873 = vmul.f32 %v868, %v872
        %vm874 = vweird.f32 %v789
        %vm875 = vweird.f32 %v868
        %vm876 = vmor %vm874, %vm875
        %v877 = vsel %vm876, %v868, %v873
        %v878 = vrsqrt.pop %v790
        %v879 = vmul.f32 %v878, %v790
        %v880 = vmul.f32 %v879, %v878
        %v881 = vmul.f32 0.5, %v880
        %v882 = vsub.f32 1.5, %v881
        %v883 = vmul.f32 %v878, %v882
        %vm884 = vweird.f32 %v790
        %vm885 = vweird.f32 %v878
        %vm886 = vmor %vm884, %vm885
        %v887 = vsel %vm886, %v878, %v883
        %v888 = vrsqrt.pop %v791
        %v889 = vmul.f32 %v888, %v791
        %v890 = vmul.f32 %v889, %v888
        %v891 = vmul.f32 0.5, %v890
        %v892 = vsub.f32 1.5, %v891
        %v893 = vmul.f32 %v888, %v892
        %vm894 = vweird.f32 %v791
        %vm895 = vweird.f32 %v888
        %vm896 = vmor %vm894, %vm895
        %v897 = vsel %vm896, %v888, %v893
        %v898 = vrsqrt.pop %v792
        %v899 = vmul.f32 %v898, %v792
        %v900 = vmul.f32 %v899, %v898
        %v901 = vmul.f32 0.5, %v900
        %v902 = vsub.f32 1.5, %v901
        %v903 = vmul.f32 %v898, %v902
        %vm904 = vweird.f32 %v792
        %vm905 = vweird.f32 %v898
        %vm906 = vmor %vm904, %vm905
        %v907 = vsel %vm906, %v898, %v903
        %v908 = vrsqrt.pop %v793
        %v909 = vmul.f32 %v908, %v793
        %v910 = vmul.f32 %v909, %v908
        %v911 = vmul.f32 0.5, %v910
        %v912 = vsub.f32 1.5, %v911
        %v913 = vmul.f32 %v908, %v912
        %vm914 = vweird.f32 %v793
        %vm915 = vweird.f32 %v908
        %vm916 = vmor %vm914, %vm915
        %v917 = vsel %vm916, %v908, %v913
        %v918 = vrsqrt.pop %v794
        %v919 = vmul.f32 %v918, %v794
        %v920 = vmul.f32 %v919, %v918
        %v921 = vmul.f32 0.5, %v920
        %v922 = vsub.f32 1.5, %v921
        %v923 = vmul.f32 %v918, %v922
        %vm924 = vweird.f32 %v794
        %vm925 = vweird.f32 %v918
        %vm926 = vmor %vm924, %vm925
        %v927 = vsel %vm926, %v918, %v923
        %v928 = vrsqrt.pop %v795
        %v929 = vmul.f32 %v928, %v795
        %v930 = vmul.f32 %v929, %v928
        %v931 = vmul.f32 0.5, %v930
        %v932 = vsub.f32 1.5, %v931
        %v933 = vmul.f32 %v928, %v932
        %vm934 = vweird.f32 %v795
        %vm935 = vweird.f32 %v928
        %vm936 = vmor %vm934, %vm935
        %v937 = vsel %vm936, %v928, %v933
        %v938 = vrsqrt.pop %v796
        %v939 = vmul.f32 %v938, %v796
        %v940 = vmul.f32 %v939, %v938
        %v941 = vmul.f32 0.5, %v940
        %v942 = vsub.f32 1.5, %v941
        %v943 = vmul.f32 %v938, %v942
        %vm944 = vweird.f32 %v796
        %vm945 = vweird.f32 %v938
        %vm946 = vmor %vm944, %vm945
        %v947 = vsel %vm946, %v938, %v943
        %v948 = vrsqrt.pop %v797
        %v949 = vmul.f32 %v948, %v797
        %v950 = vmul.f32 %v949, %v948
        %v951 = vmul.f32 0.5, %v950
        %v952 = vsub.f32 1.5, %v951
        %v953 = vmul.f32 %v948, %v952
        %vm954 = vweird.f32 %v797
        %vm955 = vweird.f32 %v948
        %vm956 = vmor %vm954, %vm955
        %v957 = vsel %vm956, %v948, %v953
        %v958 = vmul.f32 %v750, %v807
        %v959 = vmul.f32 %v751, %v807
        %v960 = vmul.f32 %v752, %v817
        %v961 = vmul.f32 %v753, %v817
        %v962 = vmul.f32 %v754, %v827
        %v963 = vmul.f32 %v755, %v827
        %v964 = vmul.f32 %v756, %v837
        %v965 = vmul.f32 %v757, %v837
        %v966 = vmul.f32 %v758, %v847
        %v967 = vmul.f32 %v759, %v847
        %v968 = vmul.f32 %v760, %v857
        %v969 = vmul.f32 %v761, %v857
        %v970 = vmul.f32 %v762, %v867
        %v971 = vmul.f32 %v763, %v867
        %v972 = vmul.f32 %v764, %v877
        %v973 = vmul.f32 %v765, %v877
        %v974 = vmul.f32 %v766, %v887
        %v975 = vmul.f32 %v767, %v887
        %v976 = vmul.f32 %v768, %v897
        %v977 = vmul.f32 %v769, %v897
        %v978 = vmul.f32 %v770, %v907
        %v979 = vmul.f32 %v771, %v907
        %v980 = vmul.f32 %v772, %v917
        %v981 = vmul.f32 %v773, %v917
        %v982 = vmul.f32 %v774, %v927
        %v983 = vmul.f32 %v775, %v927
        %v984 = vmul.f32 %v776, %v937
        %v985 = vmul.f32 %v777, %v937
        %v986 = vmul.f32 %v778, %v947
        %v987 = vmul.f32 %v779, %v947
        %v988 = vmul.f32 %v780, %v957
        %v989 = vmul.f32 %v781, %v957
        %v990 = vperm.slane %v259, 1
        %v991 = vperm.slane %v260, 1
        %v992 = vmul.f32 %v958, %v990
        %v993 = vmul.f32 %v959, %v991
        %v994 = vmul.f32 %v960, %v990
        %v995 = vmul.f32 %v961, %v991
        %v996 = vmul.f32 %v962, %v990
        %v997 = vmul.f32 %v963, %v991
        %v998 = vmul.f32 %v964, %v990
        %v999 = vmul.f32 %v965, %v991
        %v1000 = vmul.f32 %v966, %v990
        %v1001 = vmul.f32 %v967, %v991
        %v1002 = vmul.f32 %v968, %v990
        %v1003 = vmul.f32 %v969, %v991
        %v1004 = vmul.f32 %v970, %v990
        %v1005 = vmul.f32 %v971, %v991
        %v1006 = vmul.f32 %v972, %v990
        %v1007 = vmul.f32 %v973, %v991
        %v1008 = vmul.f32 %v974, %v990
        %v1009 = vmul.f32 %v975, %v991
        %v1010 = vmul.f32 %v976, %v990
        %v1011 = vmul.f32 %v977, %v991
        %v1012 = vmul.f32 %v978, %v990
        %v1013 = vmul.f32 %v979, %v991
        %v1014 = vmul.f32 %v980, %v990
        %v1015 = vmul.f32 %v981, %v991
        %v1016 = vmul.f32 %v982, %v990
        %v1017 = vmul.f32 %v983, %v991
        %v1018 = vmul.f32 %v984, %v990
        %v1019 = vmul.f32 %v985, %v991
        %v1020 = vmul.f32 %v986, %v990
        %v1021 = vmul.f32 %v987, %v991
        %v1022 = vmul.f32 %v988, %v990
        %v1023 = vmul.f32 %v989, %v991
        %v1024 = vperm.slane %v259, 2
        %v1025 = vperm.slane %v260, 2
        %v1026 = vadd.f32 %v992, %v1024
        %v1027 = vadd.f32 %v993, %v1025
        %v1028 = vadd.f32 %v994, %v1024
        %v1029 = vadd.f32 %v995, %v1025
        %v1030 = vadd.f32 %v996, %v1024
        %v1031 = vadd.f32 %v997, %v1025
        %v1032 = vadd.f32 %v998, %v1024
        %v1033 = vadd.f32 %v999, %v1025
        %v1034 = vadd.f32 %v1000, %v1024
        %v1035 = vadd.f32 %v1001, %v1025
        %v1036 = vadd.f32 %v1002, %v1024
        %v1037 = vadd.f32 %v1003, %v1025
        %v1038 = vadd.f32 %v1004, %v1024
        %v1039 = vadd.f32 %v1005, %v1025
        %v1040 = vadd.f32 %v1006, %v1024
        %v1041 = vadd.f32 %v1007, %v1025
        %v1042 = vadd.f32 %v1008, %v1024
        %v1043 = vadd.f32 %v1009, %v1025
        %v1044 = vadd.f32 %v1010, %v1024
        %v1045 = vadd.f32 %v1011, %v1025
        %v1046 = vadd.f32 %v1012, %v1024
        %v1047 = vadd.f32 %v1013, %v1025
        %v1048 = vadd.f32 %v1014, %v1024
        %v1049 = vadd.f32 %v1015, %v1025
        %v1050 = vadd.f32 %v1016, %v1024
        %v1051 = vadd.f32 %v1017, %v1025
        %v1052 = vadd.f32 %v1018, %v1024
        %v1053 = vadd.f32 %v1019, %v1025
        %v1054 = vadd.f32 %v1020, %v1024
        %v1055 = vadd.f32 %v1021, %v1025
        %v1056 = vadd.f32 %v1022, %v1024
        %v1057 = vadd.f32 %v1023, %v1025
        %v1058 = vld [vmem:[%s2] sm:$0xff]
        %v1059 = vld [vmem:[%s2 + $0x8] sm:$0xff]
        %v1060 = vld [vmem:[%s2 + $0x10] sm:$0xff]
        %v1061 = vld [vmem:[%s2 + $0x18] sm:$0xff]
        %v1062 = vld [vmem:[%s2 + $0x20] sm:$0xff]
        %v1063 = vld [vmem:[%s2 + $0x28] sm:$0xff]
        %v1064 = vld [vmem:[%s2 + $0x30] sm:$0xff]
        %v1065 = vld [vmem:[%s2 + $0x38] sm:$0xff]
        %v1066 = vld [vmem:[%s2 + $0x40] sm:$0xff]
        %v1067 = vld [vmem:[%s2 + $0x48] sm:$0xff]
        %v1068 = vld [vmem:[%s2 + $0x50] sm:$0xff]
        %v1069 = vld [vmem:[%s2 + $0x58] sm:$0xff]
        %v1070 = vld [vmem:[%s2 + $0x60] sm:$0xff]
        %v1071 = vld [vmem:[%s2 + $0x68] sm:$0xff]
        %v1072 = vld [vmem:[%s2 + $0x70] sm:$0xff]
        %v1073 = vld [vmem:[%s2 + $0x78] sm:$0xff]
        %v1074 = vld [vmem:[%s2 + $0x80] sm:$0xff]
        %v1075 = vld [vmem:[%s2 + $0x88] sm:$0xff]
        %v1076 = vld [vmem:[%s2 + $0x90] sm:$0xff]
        %v1077 = vld [vmem:[%s2 + $0x98] sm:$0xff]
        %v1078 = vld [vmem:[%s2 + $0xa0] sm:$0xff]
        %v1079 = vld [vmem:[%s2 + $0xa8] sm:$0xff]
        %v1080 = vld [vmem:[%s2 + $0xb0] sm:$0xff]
        %v1081 = vld [vmem:[%s2 + $0xb8] sm:$0xff]
        %v1082 = vld [vmem:[%s2 + $0xc0] sm:$0xff]
        %v1083 = vld [vmem:[%s2 + $0xc8] sm:$0xff]
        %v1084 = vld [vmem:[%s2 + $0xd0] sm:$0xff]
        %v1085 = vld [vmem:[%s2 + $0xd8] sm:$0xff]
        %v1086 = vld [vmem:[%s2 + $0xe0] sm:$0xff]
        %v1087 = vld [vmem:[%s2 + $0xe8] sm:$0xff]
        %v1088 = vld [vmem:[%s2 + $0xf0] sm:$0xff]
        %v1089 = vld [vmem:[%s2 + $0xf8] sm:$0xff]
        %v1090 = vld [vmem:[%s2 + $0x100] sm:$0xff]
        %v1091 = vld [vmem:[%s2 + $0x108] sm:$0xff]
        %v1092 = vld [vmem:[%s2 + $0x110] sm:$0xff]
        %v1093 = vld [vmem:[%s2 + $0x118] sm:$0xff]
        %v1094 = vld [vmem:[%s2 + $0x120] sm:$0xff]
        %v1095 = vld [vmem:[%s2 + $0x128] sm:$0xff]
        %v1096 = vld [vmem:[%s2 + $0x130] sm:$0xff]
        %v1097 = vld [vmem:[%s2 + $0x138] sm:$0xff]
        %v1098 = vld [vmem:[%s2 + $0x140] sm:$0xff]
        %v1099 = vld [vmem:[%s2 + $0x148] sm:$0xff]
        %v1100 = vld [vmem:[%s2 + $0x150] sm:$0xff]
        %v1101 = vld [vmem:[%s2 + $0x158] sm:$0xff]
        %v1102 = vld [vmem:[%s2 + $0x160] sm:$0xff]
        %v1103 = vld [vmem:[%s2 + $0x168] sm:$0xff]
        %v1104 = vld [vmem:[%s2 + $0x170] sm:$0xff]
        %v1105 = vld [vmem:[%s2 + $0x178] sm:$0xff]
        %v1106 = vld [vmem:[%s2 + $0x180] sm:$0xff]
        %v1107 = vld [vmem:[%s2 + $0x188] sm:$0xff]
        %v1108 = vld [vmem:[%s2 + $0x190] sm:$0xff]
        %v1109 = vld [vmem:[%s2 + $0x198] sm:$0xff]
        %v1110 = vld [vmem:[%s2 + $0x1a0] sm:$0xff]
        %v1111 = vld [vmem:[%s2 + $0x1a8] sm:$0xff]
        %v1112 = vld [vmem:[%s2 + $0x1b0] sm:$0xff]
        %v1113 = vld [vmem:[%s2 + $0x1b8] sm:$0xff]
        %v1114 = vld [vmem:[%s2 + $0x1c0] sm:$0xff]
        %v1115 = vld [vmem:[%s2 + $0x1c8] sm:$0xff]
        %v1116 = vld [vmem:[%s2 + $0x1d0] sm:$0xff]
        %v1117 = vld [vmem:[%s2 + $0x1d8] sm:$0xff]
        %v1118 = vld [vmem:[%s2 + $0x1e0] sm:$0xff]
        %v1119 = vld [vmem:[%s2 + $0x1e8] sm:$0xff]
        %v1120 = vld [vmem:[%s2 + $0x1f0] sm:$0xff]
        %v1121 = vld [vmem:[%s2 + $0x1f8] sm:$0xff]
        %v1122 = vperm.slane %v259, 3
        %v1123 = vperm.slane %v260, 3
        %1124 = vmatpush.msra.mxu0 %v1088
        %1125 = vmatpush.msra.mxu0 %v1086
        %1126 = vmatpush.msra.mxu0 %v1084
        %1127 = vmatpush.msra.mxu0 %v1082
        %1128 = vmatpush.msra.mxu0 %v1080
        %1129 = vmatpush.msra.mxu0 %v1078
        %1130 = vmatpush.msra.mxu0 %v1076
        %1131 = vmatpush.msra.mxu0 %v1074
        %1132 = vmatpush.msra.mxu0 %v1072
        %1133 = vmatpush.msra.mxu0 %v1070
        %1134 = vmatpush.msra.mxu0 %v1068
        %1135 = vmatpush.msra.mxu0 %v1066
        %1136 = vmatpush.msra.mxu0 %v1064
        %1137 = vmatpush.msra.mxu0 %v1062
        %1138 = vmatpush.msra.mxu0 %v1060
        %1139 = vmatpush.msra.mxu0 %v1058
        %1140 = vmatmul.f32.gmra.mxu0 %v1026
        %v1141 = vpop.f32.mrf.mxu0
        %v1142 = vadd.f32 %v1122, %v1141
        %1143 = vmatmul.f32.gmra.mxu0 %v1028
        %v1144 = vpop.f32.mrf.mxu0
        %v1145 = vadd.f32 %v1122, %v1144
        %1146 = vmatmul.f32.gmra.mxu0 %v1030
        %v1147 = vpop.f32.mrf.mxu0
        %v1148 = vadd.f32 %v1122, %v1147
        %1149 = vmatmul.f32.gmra.mxu0 %v1032
        %v1150 = vpop.f32.mrf.mxu0
        %v1151 = vadd.f32 %v1122, %v1150
        %1152 = vmatmul.f32.gmra.mxu0 %v1034
        %v1153 = vpop.f32.mrf.mxu0
        %v1154 = vadd.f32 %v1122, %v1153
        %1155 = vmatmul.f32.gmra.mxu0 %v1036
        %v1156 = vpop.f32.mrf.mxu0
        %v1157 = vadd.f32 %v1122, %v1156
        %1158 = vmatmul.f32.gmra.mxu0 %v1038
        %v1159 = vpop.f32.mrf.mxu0
        %v1160 = vadd.f32 %v1122, %v1159
        %1161 = vmatmul.f32.gmra.mxu0 %v1040
        %v1162 = vpop.f32.mrf.mxu0
        %v1163 = vadd.f32 %v1122, %v1162
        %1164 = vmatmul.f32.gmra.mxu0 %v1042
        %v1165 = vpop.f32.mrf.mxu0
        %v1166 = vadd.f32 %v1122, %v1165
        %1167 = vmatmul.f32.gmra.mxu0 %v1044
        %v1168 = vpop.f32.mrf.mxu0
        %v1169 = vadd.f32 %v1122, %v1168
        %1170 = vmatmul.f32.gmra.mxu0 %v1046
        %v1171 = vpop.f32.mrf.mxu0
        %v1172 = vadd.f32 %v1122, %v1171
        %1173 = vmatmul.f32.gmra.mxu0 %v1048
        %v1174 = vpop.f32.mrf.mxu0
        %v1175 = vadd.f32 %v1122, %v1174
        %1176 = vmatmul.f32.gmra.mxu0 %v1050
        %v1177 = vpop.f32.mrf.mxu0
        %v1178 = vadd.f32 %v1122, %v1177
        %1179 = vmatmul.f32.gmra.mxu0 %v1052
        %v1180 = vpop.f32.mrf.mxu0
        %v1181 = vadd.f32 %v1122, %v1180
        %1182 = vmatmul.f32.gmra.mxu0 %v1054
        %v1183 = vpop.f32.mrf.mxu0
        %v1184 = vadd.f32 %v1122, %v1183
        %1185 = vmatmul.f32.gmra.mxu0 %v1056
        %v1186 = vpop.f32.mrf.mxu0
        %v1187 = vadd.f32 %v1122, %v1186
        %1188 = vdwg.mxu0
        %1189 = vmatpush.msra.mxu0 %v1120
        %1190 = vmatpush.msra.mxu0 %v1118
        %1191 = vmatpush.msra.mxu0 %v1116
        %1192 = vmatpush.msra.mxu0 %v1114
        %1193 = vmatpush.msra.mxu0 %v1112
        %1194 = vmatpush.msra.mxu0 %v1110
        %1195 = vmatpush.msra.mxu0 %v1108
        %1196 = vmatpush.msra.mxu0 %v1106
        %1197 = vmatpush.msra.mxu0 %v1104
        %1198 = vmatpush.msra.mxu0 %v1102
        %1199 = vmatpush.msra.mxu0 %v1100
        %1200 = vmatpush.msra.mxu0 %v1098
        %1201 = vmatpush.msra.mxu0 %v1096
        %1202 = vmatpush.msra.mxu0 %v1094
        %1203 = vmatpush.msra.mxu0 %v1092
        %1204 = vmatpush.msra.mxu0 %v1090
        %1205 = vmatmul.f32.gmra.mxu0 %v1027
        %v1206 = vpop.f32.mrf.mxu0
        %v1207 = vadd.f32 %v1142, %v1206
        %1208 = vmatmul.f32.gmra.mxu0 %v1029
        %v1209 = vpop.f32.mrf.mxu0
        %v1210 = vadd.f32 %v1145, %v1209
        %1211 = vmatmul.f32.gmra.mxu0 %v1031
        %v1212 = vpop.f32.mrf.mxu0
        %v1213 = vadd.f32 %v1148, %v1212
        %1214 = vmatmul.f32.gmra.mxu0 %v1033
        %v1215 = vpop.f32.mrf.mxu0
        %v1216 = vadd.f32 %v1151, %v1215
        %1217 = vmatmul.f32.gmra.mxu0 %v1035
        %v1218 = vpop.f32.mrf.mxu0
        %v1219 = vadd.f32 %v1154, %v1218
        %1220 = vmatmul.f32.gmra.mxu0 %v1037
        %v1221 = vpop.f32.mrf.mxu0
        %v1222 = vadd.f32 %v1157, %v1221
        %1223 = vmatmul.f32.gmra.mxu0 %v1039
        %v1224 = vpop.f32.mrf.mxu0
        %v1225 = vadd.f32 %v1160, %v1224
        %1226 = vmatmul.f32.gmra.mxu0 %v1041
        %v1227 = vpop.f32.mrf.mxu0
        %v1228 = vadd.f32 %v1163, %v1227
        %1229 = vmatmul.f32.gmra.mxu0 %v1043
        %v1230 = vpop.f32.mrf.mxu0
        %v1231 = vadd.f32 %v1166, %v1230
        %1232 = vmatmul.f32.gmra.mxu0 %v1045
        %v1233 = vpop.f32.mrf.mxu0
        %v1234 = vadd.f32 %v1169, %v1233
        %1235 = vmatmul.f32.gmra.mxu0 %v1047
        %v1236 = vpop.f32.mrf.mxu0
        %v1237 = vadd.f32 %v1172, %v1236
        %1238 = vmatmul.f32.gmra.mxu0 %v1049
        %v1239 = vpop.f32.mrf.mxu0
        %v1240 = vadd.f32 %v1175, %v1239
        %1241 = vmatmul.f32.gmra.mxu0 %v1051
        %v1242 = vpop.f32.mrf.mxu0
        %v1243 = vadd.f32 %v1178, %v1242
        %1244 = vmatmul.f32.gmra.mxu0 %v1053
        %v1245 = vpop.f32.mrf.mxu0
        %v1246 = vadd.f32 %v1181, %v1245
        %1247 = vmatmul.f32.gmra.mxu0 %v1055
        %v1248 = vpop.f32.mrf.mxu0
        %v1249 = vadd.f32 %v1184, %v1248
        %1250 = vmatmul.f32.gmra.mxu0 %v1057
        %v1251 = vpop.f32.mrf.mxu0
        %v1252 = vadd.f32 %v1187, %v1251
        %1253 = vdwg.mxu0
        %1254 = vmatpush.msra.mxu0 %v1089
        %1255 = vmatpush.msra.mxu0 %v1087
        %1256 = vmatpush.msra.mxu0 %v1085
        %1257 = vmatpush.msra.mxu0 %v1083
        %1258 = vmatpush.msra.mxu0 %v1081
        %1259 = vmatpush.msra.mxu0 %v1079
        %1260 = vmatpush.msra.mxu0 %v1077
        %1261 = vmatpush.msra.mxu0 %v1075
        %1262 = vmatpush.msra.mxu0 %v1073
        %1263 = vmatpush.msra.mxu0 %v1071
        %1264 = vmatpush.msra.mxu0 %v1069
        %1265 = vmatpush.msra.mxu0 %v1067
        %1266 = vmatpush.msra.mxu0 %v1065
        %1267 = vmatpush.msra.mxu0 %v1063
        %1268 = vmatpush.msra.mxu0 %v1061
        %1269 = vmatpush.msra.mxu0 %v1059
        %1270 = vmatmul.f32.gmra.mxu0 %v1026
        %v1271 = vpop.f32.mrf.mxu0
        %v1272 = vadd.f32 %v1123, %v1271
        %1273 = vmatmul.f32.gmra.mxu0 %v1028
        %v1274 = vpop.f32.mrf.mxu0
        %v1275 = vadd.f32 %v1123, %v1274
        %1276 = vmatmul.f32.gmra.mxu0 %v1030
        %v1277 = vpop.f32.mrf.mxu0
        %v1278 = vadd.f32 %v1123, %v1277
        %1279 = vmatmul.f32.gmra.mxu0 %v1032
        %v1280 = vpop.f32.mrf.mxu0
        %v1281 = vadd.f32 %v1123, %v1280
        %1282 = vmatmul.f32.gmra.mxu0 %v1034
        %v1283 = vpop.f32.mrf.mxu0
        %v1284 = vadd.f32 %v1123, %v1283
        %1285 = vmatmul.f32.gmra.mxu0 %v1036
        %v1286 = vpop.f32.mrf.mxu0
        %v1287 = vadd.f32 %v1123, %v1286
        %1288 = vmatmul.f32.gmra.mxu0 %v1038
        %v1289 = vpop.f32.mrf.mxu0
        %v1290 = vadd.f32 %v1123, %v1289
        %1291 = vmatmul.f32.gmra.mxu0 %v1040
        %v1292 = vpop.f32.mrf.mxu0
        %v1293 = vadd.f32 %v1123, %v1292
        %1294 = vmatmul.f32.gmra.mxu0 %v1042
        %v1295 = vpop.f32.mrf.mxu0
        %v1296 = vadd.f32 %v1123, %v1295
        %1297 = vmatmul.f32.gmra.mxu0 %v1044
        %v1298 = vpop.f32.mrf.mxu0
        %v1299 = vadd.f32 %v1123, %v1298
        %1300 = vmatmul.f32.gmra.mxu0 %v1046
        %v1301 = vpop.f32.mrf.mxu0
        %v1302 = vadd.f32 %v1123, %v1301
        %1303 = vmatmul.f32.gmra.mxu0 %v1048
        %v1304 = vpop.f32.mrf.mxu0
        %v1305 = vadd.f32 %v1123, %v1304
        %1306 = vmatmul.f32.gmra.mxu0 %v1050
        %v1307 = vpop.f32.mrf.mxu0
        %v1308 = vadd.f32 %v1123, %v1307
        %1309 = vmatmul.f32.gmra.mxu0 %v1052
        %v1310 = vpop.f32.mrf.mxu0
        %v1311 = vadd.f32 %v1123, %v1310
        %1312 = vmatmul.f32.gmra.mxu0 %v1054
        %v1313 = vpop.f32.mrf.mxu0
        %v1314 = vadd.f32 %v1123, %v1313
        %1315 = vmatmul.f32.gmra.mxu0 %v1056
        %v1316 = vpop.f32.mrf.mxu0
        %v1317 = vadd.f32 %v1123, %v1316
        %1318 = vdwg.mxu0
        %1319 = vmatpush.msra.mxu0 %v1121
        %1320 = vmatpush.msra.mxu0 %v1119
        %1321 = vmatpush.msra.mxu0 %v1117
        %1322 = vmatpush.msra.mxu0 %v1115
        %1323 = vmatpush.msra.mxu0 %v1113
        %1324 = vmatpush.msra.mxu0 %v1111
        %1325 = vmatpush.msra.mxu0 %v1109
        %1326 = vmatpush.msra.mxu0 %v1107
        %1327 = vmatpush.msra.mxu0 %v1105
        %1328 = vmatpush.msra.mxu0 %v1103
        %1329 = vmatpush.msra.mxu0 %v1101
        %1330 = vmatpush.msra.mxu0 %v1099
        %1331 = vmatpush.msra.mxu0 %v1097
        %1332 = vmatpush.msra.mxu0 %v1095
        %1333 = vmatpush.msra.mxu0 %v1093
        %1334 = vmatpush.msra.mxu0 %v1091
        %1335 = vmatmul.f32.gmra.mxu0 %v1027
        %v1336 = vpop.f32.mrf.mxu0
        %v1337 = vadd.f32 %v1272, %v1336
        %1338 = vmatmul.f32.gmra.mxu0 %v1029
        %v1339 = vpop.f32.mrf.mxu0
        %v1340 = vadd.f32 %v1275, %v1339
        %1341 = vmatmul.f32.gmra.mxu0 %v1031
        %v1342 = vpop.f32.mrf.mxu0
        %v1343 = vadd.f32 %v1278, %v1342
        %1344 = vmatmul.f32.gmra.mxu0 %v1033
        %v1345 = vpop.f32.mrf.mxu0
        %v1346 = vadd.f32 %v1281, %v1345
        %1347 = vmatmul.f32.gmra.mxu0 %v1035
        %v1348 = vpop.f32.mrf.mxu0
        %v1349 = vadd.f32 %v1284, %v1348
        %1350 = vmatmul.f32.gmra.mxu0 %v1037
        %v1351 = vpop.f32.mrf.mxu0
        %v1352 = vadd.f32 %v1287, %v1351
        %1353 = vmatmul.f32.gmra.mxu0 %v1039
        %v1354 = vpop.f32.mrf.mxu0
        %v1355 = vadd.f32 %v1290, %v1354
        %1356 = vmatmul.f32.gmra.mxu0 %v1041
        %v1357 = vpop.f32.mrf.mxu0
        %v1358 = vadd.f32 %v1293, %v1357
        %1359 = vmatmul.f32.gmra.mxu0 %v1043
        %v1360 = vpop.f32.mrf.mxu0
        %v1361 = vadd.f32 %v1296, %v1360
        %1362 = vmatmul.f32.gmra.mxu0 %v1045
        %v1363 = vpop.f32.mrf.mxu0
        %v1364 = vadd.f32 %v1299, %v1363
        %1365 = vmatmul.f32.gmra.mxu0 %v1047
        %v1366 = vpop.f32.mrf.mxu0
        %v1367 = vadd.f32 %v1302, %v1366
        %1368 = vmatmul.f32.gmra.mxu0 %v1049
        %v1369 = vpop.f32.mrf.mxu0
        %v1370 = vadd.f32 %v1305, %v1369
        %1371 = vmatmul.f32.gmra.mxu0 %v1051
        %v1372 = vpop.f32.mrf.mxu0
        %v1373 = vadd.f32 %v1308, %v1372
        %1374 = vmatmul.f32.gmra.mxu0 %v1053
        %v1375 = vpop.f32.mrf.mxu0
        %v1376 = vadd.f32 %v1311, %v1375
        %1377 = vmatmul.f32.gmra.mxu0 %v1055
        %v1378 = vpop.f32.mrf.mxu0
        %v1379 = vadd.f32 %v1314, %v1378
        %1380 = vmatmul.f32.gmra.mxu0 %v1057
        %v1381 = vpop.f32.mrf.mxu0
        %v1382 = vadd.f32 %v1317, %v1381
        %1383 = vdwg.mxu0
        %vm1384 = vcmp.gt.f32.partialorder %v1207, 0.0
        %vm1385 = vcmp.gt.f32.partialorder %v1337, 0.0
        %vm1386 = vcmp.gt.f32.partialorder %v1210, 0.0
        %vm1387 = vcmp.gt.f32.partialorder %v1340, 0.0
        %vm1388 = vcmp.gt.f32.partialorder %v1213, 0.0
        %vm1389 = vcmp.gt.f32.partialorder %v1343, 0.0
        %vm1390 = vcmp.gt.f32.partialorder %v1216, 0.0
        %vm1391 = vcmp.gt.f32.partialorder %v1346, 0.0
        %vm1392 = vcmp.gt.f32.partialorder %v1219, 0.0
        %vm1393 = vcmp.gt.f32.partialorder %v1349, 0.0
        %vm1394 = vcmp.gt.f32.partialorder %v1222, 0.0
        %vm1395 = vcmp.gt.f32.partialorder %v1352, 0.0
        %vm1396 = vcmp.gt.f32.partialorder %v1225, 0.0
        %vm1397 = vcmp.gt.f32.partialorder %v1355, 0.0
        %vm1398 = vcmp.gt.f32.partialorder %v1228, 0.0
        %vm1399 = vcmp.gt.f32.partialorder %v1358, 0.0
        %vm1400 = vcmp.gt.f32.partialorder %v1231, 0.0
        %vm1401 = vcmp.gt.f32.partialorder %v1361, 0.0
        %vm1402 = vcmp.gt.f32.partialorder %v1234, 0.0
        %vm1403 = vcmp.gt.f32.partialorder %v1364, 0.0
        %vm1404 = vcmp.gt.f32.partialorder %v1237, 0.0
        %vm1405 = vcmp.gt.f32.partialorder %v1367, 0.0
        %vm1406 = vcmp.gt.f32.partialorder %v1240, 0.0
        %vm1407 = vcmp.gt.f32.partialorder %v1370, 0.0
        %vm1408 = vcmp.gt.f32.partialorder %v1243, 0.0
        %vm1409 = vcmp.gt.f32.partialorder %v1373, 0.0
        %vm1410 = vcmp.gt.f32.partialorder %v1246, 0.0
        %vm1411 = vcmp.gt.f32.partialorder %v1376, 0.0
        %vm1412 = vcmp.gt.f32.partialorder %v1249, 0.0
        %vm1413 = vcmp.gt.f32.partialorder %v1379, 0.0
        %vm1414 = vcmp.gt.f32.partialorder %v1252, 0.0
        %vm1415 = vcmp.gt.f32.partialorder %v1382, 0.0
        %v1416 = vmul.f32 %v1207, 0.1
        %v1417 = vmul.f32 %v1337, 0.1
        %v1418 = vmul.f32 %v1210, 0.1
        %v1419 = vmul.f32 %v1340, 0.1
        %v1420 = vmul.f32 %v1213, 0.1
        %v1421 = vmul.f32 %v1343, 0.1
        %v1422 = vmul.f32 %v1216, 0.1
        %v1423 = vmul.f32 %v1346, 0.1
        %v1424 = vmul.f32 %v1219, 0.1
        %v1425 = vmul.f32 %v1349, 0.1
        %v1426 = vmul.f32 %v1222, 0.1
        %v1427 = vmul.f32 %v1352, 0.1
        %v1428 = vmul.f32 %v1225, 0.1
        %v1429 = vmul.f32 %v1355, 0.1
        %v1430 = vmul.f32 %v1228, 0.1
        %v1431 = vmul.f32 %v1358, 0.1
        %v1432 = vmul.f32 %v1231, 0.1
        %v1433 = vmul.f32 %v1361, 0.1
        %v1434 = vmul.f32 %v1234, 0.1
        %v1435 = vmul.f32 %v1364, 0.1
        %v1436 = vmul.f32 %v1237, 0.1
        %v1437 = vmul.f32 %v1367, 0.1
        %v1438 = vmul.f32 %v1240, 0.1
        %v1439 = vmul.f32 %v1370, 0.1
        %v1440 = vmul.f32 %v1243, 0.1
        %v1441 = vmul.f32 %v1373, 0.1
        %v1442 = vmul.f32 %v1246, 0.1
        %v1443 = vmul.f32 %v1376, 0.1
        %v1444 = vmul.f32 %v1249, 0.1
        %v1445 = vmul.f32 %v1379, 0.1
        %v1446 = vmul.f32 %v1252, 0.1
        %v1447 = vmul.f32 %v1382, 0.1
        %v1448 = vsel %vm1384, %v1207, %v1416
        %v1449 = vsel %vm1385, %v1337, %v1417
        %v1450 = vsel %vm1386, %v1210, %v1418
        %v1451 = vsel %vm1387, %v1340, %v1419
        %v1452 = vsel %vm1388, %v1213, %v1420
        %v1453 = vsel %vm1389, %v1343, %v1421
        %v1454 = vsel %vm1390, %v1216, %v1422
        %v1455 = vsel %vm1391, %v1346, %v1423
        %v1456 = vsel %vm1392, %v1219, %v1424
        %v1457 = vsel %vm1393, %v1349, %v1425
        %v1458 = vsel %vm1394, %v1222, %v1426
        %v1459 = vsel %vm1395, %v1352, %v1427
        %v1460 = vsel %vm1396, %v1225, %v1428
        %v1461 = vsel %vm1397, %v1355, %v1429
        %v1462 = vsel %vm1398, %v1228, %v1430
        %v1463 = vsel %vm1399, %v1358, %v1431
        %v1464 = vsel %vm1400, %v1231, %v1432
        %v1465 = vsel %vm1401, %v1361, %v1433
        %v1466 = vsel %vm1402, %v1234, %v1434
        %v1467 = vsel %vm1403, %v1364, %v1435
        %v1468 = vsel %vm1404, %v1237, %v1436
        %v1469 = vsel %vm1405, %v1367, %v1437
        %v1470 = vsel %vm1406, %v1240, %v1438
        %v1471 = vsel %vm1407, %v1370, %v1439
        %v1472 = vsel %vm1408, %v1243, %v1440
        %v1473 = vsel %vm1409, %v1373, %v1441
        %v1474 = vsel %vm1410, %v1246, %v1442
        %v1475 = vsel %vm1411, %v1376, %v1443
        %v1476 = vsel %vm1412, %v1249, %v1444
        %v1477 = vsel %vm1413, %v1379, %v1445
        %v1478 = vsel %vm1414, %v1252, %v1446
        %v1479 = vsel %vm1415, %v1382, %v1447
        %v1480 = vadd.f32 %v1448, %v1449
        %1481 = vadd.xlane.f32.xlu0 %v1480
        %v1482 = vpop.xlane.xlu0 %1481
        %v1483 = vadd.f32 %v1450, %v1451
        %1484 = vadd.xlane.f32.xlu0 %v1483
        %v1485 = vpop.xlane.xlu0 %1484
        %v1486 = vadd.f32 %v1452, %v1453
        %1487 = vadd.xlane.f32.xlu0 %v1486
        %v1488 = vpop.xlane.xlu0 %1487
        %v1489 = vadd.f32 %v1454, %v1455
        %1490 = vadd.xlane.f32.xlu0 %v1489
        %v1491 = vpop.xlane.xlu0 %1490
        %v1492 = vadd.f32 %v1456, %v1457
        %1493 = vadd.xlane.f32.xlu0 %v1492
        %v1494 = vpop.xlane.xlu0 %1493
        %v1495 = vadd.f32 %v1458, %v1459
        %1496 = vadd.xlane.f32.xlu0 %v1495
        %v1497 = vpop.xlane.xlu0 %1496
        %v1498 = vadd.f32 %v1460, %v1461
        %1499 = vadd.xlane.f32.xlu0 %v1498
        %v1500 = vpop.xlane.xlu0 %1499
        %v1501 = vadd.f32 %v1462, %v1463
        %1502 = vadd.xlane.f32.xlu0 %v1501
        %v1503 = vpop.xlane.xlu0 %1502
        %v1504 = vadd.f32 %v1464, %v1465
        %1505 = vadd.xlane.f32.xlu0 %v1504
        %v1506 = vpop.xlane.xlu0 %1505
        %v1507 = vadd.f32 %v1466, %v1467
        %1508 = vadd.xlane.f32.xlu0 %v1507
        %v1509 = vpop.xlane.xlu0 %1508
        %v1510 = vadd.f32 %v1468, %v1469
        %1511 = vadd.xlane.f32.xlu0 %v1510
        %v1512 = vpop.xlane.xlu0 %1511
        %v1513 = vadd.f32 %v1470, %v1471
        %1514 = vadd.xlane.f32.xlu0 %v1513
        %v1515 = vpop.xlane.xlu0 %1514
        %v1516 = vadd.f32 %v1472, %v1473
        %1517 = vadd.xlane.f32.xlu0 %v1516
        %v1518 = vpop.xlane.xlu0 %1517
        %v1519 = vadd.f32 %v1474, %v1475
        %1520 = vadd.xlane.f32.xlu0 %v1519
        %v1521 = vpop.xlane.xlu0 %1520
        %v1522 = vadd.f32 %v1476, %v1477
        %1523 = vadd.xlane.f32.xlu0 %v1522
        %v1524 = vpop.xlane.xlu0 %1523
        %v1525 = vadd.f32 %v1478, %v1479
        %1526 = vadd.xlane.f32.xlu0 %v1525
        %v1527 = vpop.xlane.xlu0 %1526
        %v1528 = vmul.f32 %v1482, 0.00390625
        %v1529 = vmul.f32 %v1485, 0.00390625
        %v1530 = vmul.f32 %v1488, 0.00390625
        %v1531 = vmul.f32 %v1491, 0.00390625
        %v1532 = vmul.f32 %v1494, 0.00390625
        %v1533 = vmul.f32 %v1497, 0.00390625
        %v1534 = vmul.f32 %v1500, 0.00390625
        %v1535 = vmul.f32 %v1503, 0.00390625
        %v1536 = vmul.f32 %v1506, 0.00390625
        %v1537 = vmul.f32 %v1509, 0.00390625
        %v1538 = vmul.f32 %v1512, 0.00390625
        %v1539 = vmul.f32 %v1515, 0.00390625
        %v1540 = vmul.f32 %v1518, 0.00390625
        %v1541 = vmul.f32 %v1521, 0.00390625
        %v1542 = vmul.f32 %v1524, 0.00390625
        %v1543 = vmul.f32 %v1527, 0.00390625
        %v1544 = vmul.f32 %v1448, %v1448
        %v1545 = vmul.f32 %v1449, %v1449
        %v1546 = vmul.f32 %v1450, %v1450
        %v1547 = vmul.f32 %v1451, %v1451
        %v1548 = vmul.f32 %v1452, %v1452
        %v1549 = vmul.f32 %v1453, %v1453
        %v1550 = vmul.f32 %v1454, %v1454
        %v1551 = vmul.f32 %v1455, %v1455
        %v1552 = vmul.f32 %v1456, %v1456
        %v1553 = vmul.f32 %v1457, %v1457
        %v1554 = vmul.f32 %v1458, %v1458
        %v1555 = vmul.f32 %v1459, %v1459
        %v1556 = vmul.f32 %v1460, %v1460
        %v1557 = vmul.f32 %v1461, %v1461
        %v1558 = vmul.f32 %v1462, %v1462
        %v1559 = vmul.f32 %v1463, %v1463
        %v1560 = vmul.f32 %v1464, %v1464
        %v1561 = vmul.f32 %v1465, %v1465
        %v1562 = vmul.f32 %v1466, %v1466
        %v1563 = vmul.f32 %v1467, %v1467
        %v1564 = vmul.f32 %v1468, %v1468
        %v1565 = vmul.f32 %v1469, %v1469
        %v1566 = vmul.f32 %v1470, %v1470
        %v1567 = vmul.f32 %v1471, %v1471
        %v1568 = vmul.f32 %v1472, %v1472
        %v1569 = vmul.f32 %v1473, %v1473
        %v1570 = vmul.f32 %v1474, %v1474
        %v1571 = vmul.f32 %v1475, %v1475
        %v1572 = vmul.f32 %v1476, %v1476
        %v1573 = vmul.f32 %v1477, %v1477
        %v1574 = vmul.f32 %v1478, %v1478
        %v1575 = vmul.f32 %v1479, %v1479
        %v1576 = vadd.f32 %v1544, %v1545
        %1577 = vadd.xlane.f32.xlu0 %v1576
        %v1578 = vpop.xlane.xlu0 %1577
        %v1579 = vadd.f32 %v1546, %v1547
        %1580 = vadd.xlane.f32.xlu0 %v1579
        %v1581 = vpop.xlane.xlu0 %1580
        %v1582 = vadd.f32 %v1548, %v1549
        %1583 = vadd.xlane.f32.xlu0 %v1582
        %v1584 = vpop.xlane.xlu0 %1583
        %v1585 = vadd.f32 %v1550, %v1551
        %1586 = vadd.xlane.f32.xlu0 %v1585
        %v1587 = vpop.xlane.xlu0 %1586
        %v1588 = vadd.f32 %v1552, %v1553
        %1589 = vadd.xlane.f32.xlu0 %v1588
        %v1590 = vpop.xlane.xlu0 %1589
        %v1591 = vadd.f32 %v1554, %v1555
        %1592 = vadd.xlane.f32.xlu0 %v1591
        %v1593 = vpop.xlane.xlu0 %1592
        %v1594 = vadd.f32 %v1556, %v1557
        %1595 = vadd.xlane.f32.xlu0 %v1594
        %v1596 = vpop.xlane.xlu0 %1595
        %v1597 = vadd.f32 %v1558, %v1559
        %1598 = vadd.xlane.f32.xlu0 %v1597
        %v1599 = vpop.xlane.xlu0 %1598
        %v1600 = vadd.f32 %v1560, %v1561
        %1601 = vadd.xlane.f32.xlu0 %v1600
        %v1602 = vpop.xlane.xlu0 %1601
        %v1603 = vadd.f32 %v1562, %v1563
        %1604 = vadd.xlane.f32.xlu0 %v1603
        %v1605 = vpop.xlane.xlu0 %1604
        %v1606 = vadd.f32 %v1564, %v1565
        %1607 = vadd.xlane.f32.xlu0 %v1606
        %v1608 = vpop.xlane.xlu0 %1607
        %v1609 = vadd.f32 %v1566, %v1567
        %1610 = vadd.xlane.f32.xlu0 %v1609
        %v1611 = vpop.xlane.xlu0 %1610
        %v1612 = vadd.f32 %v1568, %v1569
        %1613 = vadd.xlane.f32.xlu0 %v1612
        %v1614 = vpop.xlane.xlu0 %1613
        %v1615 = vadd.f32 %v1570, %v1571
        %1616 = vadd.xlane.f32.xlu0 %v1615
        %v1617 = vpop.xlane.xlu0 %1616
        %v1618 = vadd.f32 %v1572, %v1573
        %1619 = vadd.xlane.f32.xlu0 %v1618
        %v1620 = vpop.xlane.xlu0 %1619
        %v1621 = vadd.f32 %v1574, %v1575
        %1622 = vadd.xlane.f32.xlu0 %v1621
        %v1623 = vpop.xlane.xlu0 %1622
        %v1624 = vmul.f32 %v1578, 0.00390625
        %v1625 = vmul.f32 %v1581, 0.00390625
        %v1626 = vmul.f32 %v1584, 0.00390625
        %v1627 = vmul.f32 %v1587, 0.00390625
        %v1628 = vmul.f32 %v1590, 0.00390625
        %v1629 = vmul.f32 %v1593, 0.00390625
        %v1630 = vmul.f32 %v1596, 0.00390625
        %v1631 = vmul.f32 %v1599, 0.00390625
        %v1632 = vmul.f32 %v1602, 0.00390625
        %v1633 = vmul.f32 %v1605, 0.00390625
        %v1634 = vmul.f32 %v1608, 0.00390625
        %v1635 = vmul.f32 %v1611, 0.00390625
        %v1636 = vmul.f32 %v1614, 0.00390625
        %v1637 = vmul.f32 %v1617, 0.00390625
        %v1638 = vmul.f32 %v1620, 0.00390625
        %v1639 = vmul.f32 %v1623, 0.00390625
        %v1640 = vmul.f32 %v1528, %v1528
        %v1641 = vmul.f32 %v1529, %v1529
        %v1642 = vmul.f32 %v1530, %v1530
        %v1643 = vmul.f32 %v1531, %v1531
        %v1644 = vmul.f32 %v1532, %v1532
        %v1645 = vmul.f32 %v1533, %v1533
        %v1646 = vmul.f32 %v1534, %v1534
        %v1647 = vmul.f32 %v1535, %v1535
        %v1648 = vmul.f32 %v1536, %v1536
        %v1649 = vmul.f32 %v1537, %v1537
        %v1650 = vmul.f32 %v1538, %v1538
        %v1651 = vmul.f32 %v1539, %v1539
        %v1652 = vmul.f32 %v1540, %v1540
        %v1653 = vmul.f32 %v1541, %v1541
        %v1654 = vmul.f32 %v1542, %v1542
        %v1655 = vmul.f32 %v1543, %v1543
        %v1656 = vsub.f32 %v1624, %v1640
        %v1657 = vsub.f32 %v1625, %v1641
        %v1658 = vsub.f32 %v1626, %v1642
        %v1659 = vsub.f32 %v1627, %v1643
        %v1660 = vsub.f32 %v1628, %v1644
        %v1661 = vsub.f32 %v1629, %v1645
        %v1662 = vsub.f32 %v1630, %v1646
        %v1663 = vsub.f32 %v1631, %v1647
        %v1664 = vsub.f32 %v1632, %v1648
        %v1665 = vsub.f32 %v1633, %v1649
        %v1666 = vsub.f32 %v1634, %v1650
        %v1667 = vsub.f32 %v1635, %v1651
        %v1668 = vsub.f32 %v1636, %v1652
        %v1669 = vsub.f32 %v1637, %v1653
        %v1670 = vsub.f32 %v1638, %v1654
        %v1671 = vsub.f32 %v1639, %v1655
        %v1672 = vmax.f32 %v1656, 0.0
        %v1673 = vmax.f32 %v1657, 0.0
        %v1674 = vmax.f32 %v1658, 0.0
        %v1675 = vmax.f32 %v1659, 0.0
        %v1676 = vmax.f32 %v1660, 0.0
        %v1677 = vmax.f32 %v1661, 0.0
        %v1678 = vmax.f32 %v1662, 0.0
        %v1679 = vmax.f32 %v1663, 0.0
        %v1680 = vmax.f32 %v1664, 0.0
        %v1681 = vmax.f32 %v1665, 0.0
        %v1682 = vmax.f32 %v1666, 0.0
        %v1683 = vmax.f32 %v1667, 0.0
        %v1684 = vmax.f32 %v1668, 0.0
        %v1685 = vmax.f32 %v1669, 0.0
        %v1686 = vmax.f32 %v1670, 0.0
        %v1687 = vmax.f32 %v1671, 0.0
        %v1688 = vsub.f32 %v1448, %v1528
        %v1689 = vsub.f32 %v1449, %v1528
        %v1690 = vsub.f32 %v1450, %v1529
        %v1691 = vsub.f32 %v1451, %v1529
        %v1692 = vsub.f32 %v1452, %v1530
        %v1693 = vsub.f32 %v1453, %v1530
        %v1694 = vsub.f32 %v1454, %v1531
        %v1695 = vsub.f32 %v1455, %v1531
        %v1696 = vsub.f32 %v1456, %v1532
        %v1697 = vsub.f32 %v1457, %v1532
        %v1698 = vsub.f32 %v1458, %v1533
        %v1699 = vsub.f32 %v1459, %v1533
        %v1700 = vsub.f32 %v1460, %v1534
        %v1701 = vsub.f32 %v1461, %v1534
        %v1702 = vsub.f32 %v1462, %v1535
        %v1703 = vsub.f32 %v1463, %v1535
        %v1704 = vsub.f32 %v1464, %v1536
        %v1705 = vsub.f32 %v1465, %v1536
        %v1706 = vsub.f32 %v1466, %v1537
        %v1707 = vsub.f32 %v1467, %v1537
        %v1708 = vsub.f32 %v1468, %v1538
        %v1709 = vsub.f32 %v1469, %v1538
        %v1710 = vsub.f32 %v1470, %v1539
        %v1711 = vsub.f32 %v1471, %v1539
        %v1712 = vsub.f32 %v1472, %v1540
        %v1713 = vsub.f32 %v1473, %v1540
        %v1714 = vsub.f32 %v1474, %v1541
        %v1715 = vsub.f32 %v1475, %v1541
        %v1716 = vsub.f32 %v1476, %v1542
        %v1717 = vsub.f32 %v1477, %v1542
        %v1718 = vsub.f32 %v1478, %v1543
        %v1719 = vsub.f32 %v1479, %v1543
        %v1720 = vadd.f32 %v1672, 1e-05
        %v1721 = vadd.f32 %v1673, 1e-05
        %v1722 = vadd.f32 %v1674, 1e-05
        %v1723 = vadd.f32 %v1675, 1e-05
        %v1724 = vadd.f32 %v1676, 1e-05
        %v1725 = vadd.f32 %v1677, 1e-05
        %v1726 = vadd.f32 %v1678, 1e-05
        %v1727 = vadd.f32 %v1679, 1e-05
        %v1728 = vadd.f32 %v1680, 1e-05
        %v1729 = vadd.f32 %v1681, 1e-05
        %v1730 = vadd.f32 %v1682, 1e-05
        %v1731 = vadd.f32 %v1683, 1e-05
        %v1732 = vadd.f32 %v1684, 1e-05
        %v1733 = vadd.f32 %v1685, 1e-05
        %v1734 = vadd.f32 %v1686, 1e-05
        %v1735 = vadd.f32 %v1687, 1e-05
        %v1736 = vrsqrt.pop %v1720
        %v1737 = vmul.f32 %v1736, %v1720
        %v1738 = vmul.f32 %v1737, %v1736
        %v1739 = vmul.f32 0.5, %v1738
        %v1740 = vsub.f32 1.5, %v1739
        %v1741 = vmul.f32 %v1736, %v1740
        %vm1742 = vweird.f32 %v1720
        %vm1743 = vweird.f32 %v1736
        %vm1744 = vmor %vm1742, %vm1743
        %v1745 = vsel %vm1744, %v1736, %v1741
        %v1746 = vrsqrt.pop %v1721
        %v1747 = vmul.f32 %v1746, %v1721
        %v1748 = vmul.f32 %v1747, %v1746
        %v1749 = vmul.f32 0.5, %v1748
        %v1750 = vsub.f32 1.5, %v1749
        %v1751 = vmul.f32 %v1746, %v1750
        %vm1752 = vweird.f32 %v1721
        %vm1753 = vweird.f32 %v1746
        %vm1754 = vmor %vm1752, %vm1753
        %v1755 = vsel %vm1754, %v1746, %v1751
        %v1756 = vrsqrt.pop %v1722
        %v1757 = vmul.f32 %v1756, %v1722
        %v1758 = vmul.f32 %v1757, %v1756
        %v1759 = vmul.f32 0.5, %v1758
        %v1760 = vsub.f32 1.5, %v1759
        %v1761 = vmul.f32 %v1756, %v1760
        %vm1762 = vweird.f32 %v1722
        %vm1763 = vweird.f32 %v1756
        %vm1764 = vmor %vm1762, %vm1763
        %v1765 = vsel %vm1764, %v1756, %v1761
        %v1766 = vrsqrt.pop %v1723
        %v1767 = vmul.f32 %v1766, %v1723
        %v1768 = vmul.f32 %v1767, %v1766
        %v1769 = vmul.f32 0.5, %v1768
        %v1770 = vsub.f32 1.5, %v1769
        %v1771 = vmul.f32 %v1766, %v1770
        %vm1772 = vweird.f32 %v1723
        %vm1773 = vweird.f32 %v1766
        %vm1774 = vmor %vm1772, %vm1773
        %v1775 = vsel %vm1774, %v1766, %v1771
        %v1776 = vrsqrt.pop %v1724
        %v1777 = vmul.f32 %v1776, %v1724
        %v1778 = vmul.f32 %v1777, %v1776
        %v1779 = vmul.f32 0.5, %v1778
        %v1780 = vsub.f32 1.5, %v1779
        %v1781 = vmul.f32 %v1776, %v1780
        %vm1782 = vweird.f32 %v1724
        %vm1783 = vweird.f32 %v1776
        %vm1784 = vmor %vm1782, %vm1783
        %v1785 = vsel %vm1784, %v1776, %v1781
        %v1786 = vrsqrt.pop %v1725
        %v1787 = vmul.f32 %v1786, %v1725
        %v1788 = vmul.f32 %v1787, %v1786
        %v1789 = vmul.f32 0.5, %v1788
        %v1790 = vsub.f32 1.5, %v1789
        %v1791 = vmul.f32 %v1786, %v1790
        %vm1792 = vweird.f32 %v1725
        %vm1793 = vweird.f32 %v1786
        %vm1794 = vmor %vm1792, %vm1793
        %v1795 = vsel %vm1794, %v1786, %v1791
        %v1796 = vrsqrt.pop %v1726
        %v1797 = vmul.f32 %v1796, %v1726
        %v1798 = vmul.f32 %v1797, %v1796
        %v1799 = vmul.f32 0.5, %v1798
        %v1800 = vsub.f32 1.5, %v1799
        %v1801 = vmul.f32 %v1796, %v1800
        %vm1802 = vweird.f32 %v1726
        %vm1803 = vweird.f32 %v1796
        %vm1804 = vmor %vm1802, %vm1803
        %v1805 = vsel %vm1804, %v1796, %v1801
        %v1806 = vrsqrt.pop %v1727
        %v1807 = vmul.f32 %v1806, %v1727
        %v1808 = vmul.f32 %v1807, %v1806
        %v1809 = vmul.f32 0.5, %v1808
        %v1810 = vsub.f32 1.5, %v1809
        %v1811 = vmul.f32 %v1806, %v1810
        %vm1812 = vweird.f32 %v1727
        %vm1813 = vweird.f32 %v1806
        %vm1814 = vmor %vm1812, %vm1813
        %v1815 = vsel %vm1814, %v1806, %v1811
        %v1816 = vrsqrt.pop %v1728
        %v1817 = vmul.f32 %v1816, %v1728
        %v1818 = vmul.f32 %v1817, %v1816
        %v1819 = vmul.f32 0.5, %v1818
        %v1820 = vsub.f32 1.5, %v1819
        %v1821 = vmul.f32 %v1816, %v1820
        %vm1822 = vweird.f32 %v1728
        %vm1823 = vweird.f32 %v1816
        %vm1824 = vmor %vm1822, %vm1823
        %v1825 = vsel %vm1824, %v1816, %v1821
        %v1826 = vrsqrt.pop %v1729
        %v1827 = vmul.f32 %v1826, %v1729
        %v1828 = vmul.f32 %v1827, %v1826
        %v1829 = vmul.f32 0.5, %v1828
        %v1830 = vsub.f32 1.5, %v1829
        %v1831 = vmul.f32 %v1826, %v1830
        %vm1832 = vweird.f32 %v1729
        %vm1833 = vweird.f32 %v1826
        %vm1834 = vmor %vm1832, %vm1833
        %v1835 = vsel %vm1834, %v1826, %v1831
        %v1836 = vrsqrt.pop %v1730
        %v1837 = vmul.f32 %v1836, %v1730
        %v1838 = vmul.f32 %v1837, %v1836
        %v1839 = vmul.f32 0.5, %v1838
        %v1840 = vsub.f32 1.5, %v1839
        %v1841 = vmul.f32 %v1836, %v1840
        %vm1842 = vweird.f32 %v1730
        %vm1843 = vweird.f32 %v1836
        %vm1844 = vmor %vm1842, %vm1843
        %v1845 = vsel %vm1844, %v1836, %v1841
        %v1846 = vrsqrt.pop %v1731
        %v1847 = vmul.f32 %v1846, %v1731
        %v1848 = vmul.f32 %v1847, %v1846
        %v1849 = vmul.f32 0.5, %v1848
        %v1850 = vsub.f32 1.5, %v1849
        %v1851 = vmul.f32 %v1846, %v1850
        %vm1852 = vweird.f32 %v1731
        %vm1853 = vweird.f32 %v1846
        %vm1854 = vmor %vm1852, %vm1853
        %v1855 = vsel %vm1854, %v1846, %v1851
        %v1856 = vrsqrt.pop %v1732
        %v1857 = vmul.f32 %v1856, %v1732
        %v1858 = vmul.f32 %v1857, %v1856
        %v1859 = vmul.f32 0.5, %v1858
        %v1860 = vsub.f32 1.5, %v1859
        %v1861 = vmul.f32 %v1856, %v1860
        %vm1862 = vweird.f32 %v1732
        %vm1863 = vweird.f32 %v1856
        %vm1864 = vmor %vm1862, %vm1863
        %v1865 = vsel %vm1864, %v1856, %v1861
        %v1866 = vrsqrt.pop %v1733
        %v1867 = vmul.f32 %v1866, %v1733
        %v1868 = vmul.f32 %v1867, %v1866
        %v1869 = vmul.f32 0.5, %v1868
        %v1870 = vsub.f32 1.5, %v1869
        %v1871 = vmul.f32 %v1866, %v1870
        %vm1872 = vweird.f32 %v1733
        %vm1873 = vweird.f32 %v1866
        %vm1874 = vmor %vm1872, %vm1873
        %v1875 = vsel %vm1874, %v1866, %v1871
        %v1876 = vrsqrt.pop %v1734
        %v1877 = vmul.f32 %v1876, %v1734
        %v1878 = vmul.f32 %v1877, %v1876
        %v1879 = vmul.f32 0.5, %v1878
        %v1880 = vsub.f32 1.5, %v1879
        %v1881 = vmul.f32 %v1876, %v1880
        %vm1882 = vweird.f32 %v1734
        %vm1883 = vweird.f32 %v1876
        %vm1884 = vmor %vm1882, %vm1883
        %v1885 = vsel %vm1884, %v1876, %v1881
        %v1886 = vrsqrt.pop %v1735
        %v1887 = vmul.f32 %v1886, %v1735
        %v1888 = vmul.f32 %v1887, %v1886
        %v1889 = vmul.f32 0.5, %v1888
        %v1890 = vsub.f32 1.5, %v1889
        %v1891 = vmul.f32 %v1886, %v1890
        %vm1892 = vweird.f32 %v1735
        %vm1893 = vweird.f32 %v1886
        %vm1894 = vmor %vm1892, %vm1893
        %v1895 = vsel %vm1894, %v1886, %v1891
        %v1896 = vmul.f32 %v1688, %v1745
        %v1897 = vmul.f32 %v1689, %v1745
        %v1898 = vmul.f32 %v1690, %v1755
        %v1899 = vmul.f32 %v1691, %v1755
        %v1900 = vmul.f32 %v1692, %v1765
        %v1901 = vmul.f32 %v1693, %v1765
        %v1902 = vmul.f32 %v1694, %v1775
        %v1903 = vmul.f32 %v1695, %v1775
        %v1904 = vmul.f32 %v1696, %v1785
        %v1905 = vmul.f32 %v1697, %v1785
        %v1906 = vmul.f32 %v1698, %v1795
        %v1907 = vmul.f32 %v1699, %v1795
        %v1908 = vmul.f32 %v1700, %v1805
        %v1909 = vmul.f32 %v1701, %v1805
        %v1910 = vmul.f32 %v1702, %v1815
        %v1911 = vmul.f32 %v1703, %v1815
        %v1912 = vmul.f32 %v1704, %v1825
        %v1913 = vmul.f32 %v1705, %v1825
        %v1914 = vmul.f32 %v1706, %v1835
        %v1915 = vmul.f32 %v1707, %v1835
        %v1916 = vmul.f32 %v1708, %v1845
        %v1917 = vmul.f32 %v1709, %v1845
        %v1918 = vmul.f32 %v1710, %v1855
        %v1919 = vmul.f32 %v1711, %v1855
        %v1920 = vmul.f32 %v1712, %v1865
        %v1921 = vmul.f32 %v1713, %v1865
        %v1922 = vmul.f32 %v1714, %v1875
        %v1923 = vmul.f32 %v1715, %v1875
        %v1924 = vmul.f32 %v1716, %v1885
        %v1925 = vmul.f32 %v1717, %v1885
        %v1926 = vmul.f32 %v1718, %v1895
        %v1927 = vmul.f32 %v1719, %v1895
        %v1928 = vperm.slane %v259, 4
        %v1929 = vperm.slane %v260, 4
        %v1930 = vmul.f32 %v1896, %v1928
        %v1931 = vmul.f32 %v1897, %v1929
        %v1932 = vmul.f32 %v1898, %v1928
        %v1933 = vmul.f32 %v1899, %v1929
        %v1934 = vmul.f32 %v1900, %v1928
        %v1935 = vmul.f32 %v1901, %v1929
        %v1936 = vmul.f32 %v1902, %v1928
        %v1937 = vmul.f32 %v1903, %v1929
        %v1938 = vmul.f32 %v1904, %v1928
        %v1939 = vmul.f32 %v1905, %v1929
        %v1940 = vmul.f32 %v1906, %v1928
        %v1941 = vmul.f32 %v1907, %v1929
        %v1942 = vmul.f32 %v1908, %v1928
        %v1943 = vmul.f32 %v1909, %v1929
        %v1944 = vmul.f32 %v1910, %v1928
        %v1945 = vmul.f32 %v1911, %v1929
        %v1946 = vmul.f32 %v1912, %v1928
        %v1947 = vmul.f32 %v1913, %v1929
        %v1948 = vmul.f32 %v1914, %v1928
        %v1949 = vmul.f32 %v1915, %v1929
        %v1950 = vmul.f32 %v1916, %v1928
        %v1951 = vmul.f32 %v1917, %v1929
        %v1952 = vmul.f32 %v1918, %v1928
        %v1953 = vmul.f32 %v1919, %v1929
        %v1954 = vmul.f32 %v1920, %v1928
        %v1955 = vmul.f32 %v1921, %v1929
        %v1956 = vmul.f32 %v1922, %v1928
        %v1957 = vmul.f32 %v1923, %v1929
        %v1958 = vmul.f32 %v1924, %v1928
        %v1959 = vmul.f32 %v1925, %v1929
        %v1960 = vmul.f32 %v1926, %v1928
        %v1961 = vmul.f32 %v1927, %v1929
        %v1962 = vperm.slane %v259, 5
        %v1963 = vperm.slane %v260, 5
        %v1964 = vadd.f32 %v1930, %v1962
        %v1965 = vadd.f32 %v1931, %v1963
        %v1966 = vadd.f32 %v1932, %v1962
        %v1967 = vadd.f32 %v1933, %v1963
        %v1968 = vadd.f32 %v1934, %v1962
        %v1969 = vadd.f32 %v1935, %v1963
        %v1970 = vadd.f32 %v1936, %v1962
        %v1971 = vadd.f32 %v1937, %v1963
        %v1972 = vadd.f32 %v1938, %v1962
        %v1973 = vadd.f32 %v1939, %v1963
        %v1974 = vadd.f32 %v1940, %v1962
        %v1975 = vadd.f32 %v1941, %v1963
        %v1976 = vadd.f32 %v1942, %v1962
        %v1977 = vadd.f32 %v1943, %v1963
        %v1978 = vadd.f32 %v1944, %v1962
        %v1979 = vadd.f32 %v1945, %v1963
        %v1980 = vadd.f32 %v1946, %v1962
        %v1981 = vadd.f32 %v1947, %v1963
        %v1982 = vadd.f32 %v1948, %v1962
        %v1983 = vadd.f32 %v1949, %v1963
        %v1984 = vadd.f32 %v1950, %v1962
        %v1985 = vadd.f32 %v1951, %v1963
        %v1986 = vadd.f32 %v1952, %v1962
        %v1987 = vadd.f32 %v1953, %v1963
        %v1988 = vadd.f32 %v1954, %v1962
        %v1989 = vadd.f32 %v1955, %v1963
        %v1990 = vadd.f32 %v1956, %v1962
        %v1991 = vadd.f32 %v1957, %v1963
        %v1992 = vadd.f32 %v1958, %v1962
        %v1993 = vadd.f32 %v1959, %v1963
        %v1994 = vadd.f32 %v1960, %v1962
        %v1995 = vadd.f32 %v1961, %v1963
        %v1996 = vld [vmem:[%s3] sm:$0xff]
        %v1997 = vld [vmem:[%s3 + $0x8] sm:$0xff]
        %v1998 = vld [vmem:[%s3 + $0x10] sm:$0xff]
        %v1999 = vld [vmem:[%s3 + $0x18] sm:$0xff]
        %v2000 = vld [vmem:[%s3 + $0x20] sm:$0xff]
        %v2001 = vld [vmem:[%s3 + $0x28] sm:$0xff]
        %v2002 = vld [vmem:[%s3 + $0x30] sm:$0xff]
        %v2003 = vld [vmem:[%s3 + $0x38] sm:$0xff]
        %v2004 = vld [vmem:[%s3 + $0x40] sm:$0xff]
        %v2005 = vld [vmem:[%s3 + $0x48] sm:$0xff]
        %v2006 = vld [vmem:[%s3 + $0x50] sm:$0xff]
        %v2007 = vld [vmem:[%s3 + $0x58] sm:$0xff]
        %v2008 = vld [vmem:[%s3 + $0x60] sm:$0xff]
        %v2009 = vld [vmem:[%s3 + $0x68] sm:$0xff]
        %v2010 = vld [vmem:[%s3 + $0x70] sm:$0xff]
        %v2011 = vld [vmem:[%s3 + $0x78] sm:$0xff]
        %v2012 = vld [vmem:[%s3 + $0x80] sm:$0xff]
        %v2013 = vld [vmem:[%s3 + $0x88] sm:$0xff]
        %v2014 = vld [vmem:[%s3 + $0x90] sm:$0xff]
        %v2015 = vld [vmem:[%s3 + $0x98] sm:$0xff]
        %v2016 = vld [vmem:[%s3 + $0xa0] sm:$0xff]
        %v2017 = vld [vmem:[%s3 + $0xa8] sm:$0xff]
        %v2018 = vld [vmem:[%s3 + $0xb0] sm:$0xff]
        %v2019 = vld [vmem:[%s3 + $0xb8] sm:$0xff]
        %v2020 = vld [vmem:[%s3 + $0xc0] sm:$0xff]
        %v2021 = vld [vmem:[%s3 + $0xc8] sm:$0xff]
        %v2022 = vld [vmem:[%s3 + $0xd0] sm:$0xff]
        %v2023 = vld [vmem:[%s3 + $0xd8] sm:$0xff]
        %v2024 = vld [vmem:[%s3 + $0xe0] sm:$0xff]
        %v2025 = vld [vmem:[%s3 + $0xe8] sm:$0xff]
        %v2026 = vld [vmem:[%s3 + $0xf0] sm:$0xff]
        %v2027 = vld [vmem:[%s3 + $0xf8] sm:$0xff]
        %v2028 = vperm.slane %v259, 6
        %2029 = vmatpush.msra.mxu0 %v2011
        %2030 = vmatpush.msra.mxu0 %v2010
        %2031 = vmatpush.msra.mxu0 %v2009
        %2032 = vmatpush.msra.mxu0 %v2008
        %2033 = vmatpush.msra.mxu0 %v2007
        %2034 = vmatpush.msra.mxu0 %v2006
        %2035 = vmatpush.msra.mxu0 %v2005
        %2036 = vmatpush.msra.mxu0 %v2004
        %2037 = vmatpush.msra.mxu0 %v2003
        %2038 = vmatpush.msra.mxu0 %v2002
        %2039 = vmatpush.msra.mxu0 %v2001
        %2040 = vmatpush.msra.mxu0 %v2000
        %2041 = vmatpush.msra.mxu0 %v1999
        %2042 = vmatpush.msra.mxu0 %v1998
        %2043 = vmatpush.msra.mxu0 %v1997
        %2044 = vmatpush.msra.mxu0 %v1996
        %2045 = vmatmul.f32.gmra.mxu0 %v1964
        %v2046 = vpop.f32.mrf.mxu0
        %v2047 = vadd.f32 %v2028, %v2046
        %2048 = vmatmul.f32.gmra.mxu0 %v1966
        %v2049 = vpop.f32.mrf.mxu0
        %v2050 = vadd.f32 %v2028, %v2049
        %2051 = vmatmul.f32.gmra.mxu0 %v1968
        %v2052 = vpop.f32.mrf.mxu0
        %v2053 = vadd.f32 %v2028, %v2052
        %2054 = vmatmul.f32.gmra.mxu0 %v1970
        %v2055 = vpop.f32.mrf.mxu0
        %v2056 = vadd.f32 %v2028, %v2055
        %2057 = vmatmul.f32.gmra.mxu0 %v1972
        %v2058 = vpop.f32.mrf.mxu0
        %v2059 = vadd.f32 %v2028, %v2058
        %2060 = vmatmul.f32.gmra.mxu0 %v1974
        %v2061 = vpop.f32.mrf.mxu0
        %v2062 = vadd.f32 %v2028, %v2061
        %2063 = vmatmul.f32.gmra.mxu0 %v1976
        %v2064 = vpop.f32.mrf.mxu0
        %v2065 = vadd.f32 %v2028, %v2064
        %2066 = vmatmul.f32.gmra.mxu0 %v1978
        %v2067 = vpop.f32.mrf.mxu0
        %v2068 = vadd.f32 %v2028, %v2067
        %2069 = vmatmul.f32.gmra.mxu0 %v1980
        %v2070 = vpop.f32.mrf.mxu0
        %v2071 = vadd.f32 %v2028, %v2070
        %2072 = vmatmul.f32.gmra.mxu0 %v1982
        %v2073 = vpop.f32.mrf.mxu0
        %v2074 = vadd.f32 %v2028, %v2073
        %2075 = vmatmul.f32.gmra.mxu0 %v1984
        %v2076 = vpop.f32.mrf.mxu0
        %v2077 = vadd.f32 %v2028, %v2076
        %2078 = vmatmul.f32.gmra.mxu0 %v1986
        %v2079 = vpop.f32.mrf.mxu0
        %v2080 = vadd.f32 %v2028, %v2079
        %2081 = vmatmul.f32.gmra.mxu0 %v1988
        %v2082 = vpop.f32.mrf.mxu0
        %v2083 = vadd.f32 %v2028, %v2082
        %2084 = vmatmul.f32.gmra.mxu0 %v1990
        %v2085 = vpop.f32.mrf.mxu0
        %v2086 = vadd.f32 %v2028, %v2085
        %2087 = vmatmul.f32.gmra.mxu0 %v1992
        %v2088 = vpop.f32.mrf.mxu0
        %v2089 = vadd.f32 %v2028, %v2088
        %2090 = vmatmul.f32.gmra.mxu0 %v1994
        %v2091 = vpop.f32.mrf.mxu0
        %v2092 = vadd.f32 %v2028, %v2091
        %2093 = vdwg.mxu0
        %2094 = vmatpush.msra.mxu0 %v2027
        %2095 = vmatpush.msra.mxu0 %v2026
        %2096 = vmatpush.msra.mxu0 %v2025
        %2097 = vmatpush.msra.mxu0 %v2024
        %2098 = vmatpush.msra.mxu0 %v2023
        %2099 = vmatpush.msra.mxu0 %v2022
        %2100 = vmatpush.msra.mxu0 %v2021
        %2101 = vmatpush.msra.mxu0 %v2020
        %2102 = vmatpush.msra.mxu0 %v2019
        %2103 = vmatpush.msra.mxu0 %v2018
        %2104 = vmatpush.msra.mxu0 %v2017
        %2105 = vmatpush.msra.mxu0 %v2016
        %2106 = vmatpush.msra.mxu0 %v2015
        %2107 = vmatpush.msra.mxu0 %v2014
        %2108 = vmatpush.msra.mxu0 %v2013
        %2109 = vmatpush.msra.mxu0 %v2012
        %2110 = vmatmul.f32.gmra.mxu0 %v1965
        %v2111 = vpop.f32.mrf.mxu0
        %v2112 = vadd.f32 %v2047, %v2111
        %2113 = vmatmul.f32.gmra.mxu0 %v1967
        %v2114 = vpop.f32.mrf.mxu0
        %v2115 = vadd.f32 %v2050, %v2114
        %2116 = vmatmul.f32.gmra.mxu0 %v1969
        %v2117 = vpop.f32.mrf.mxu0
        %v2118 = vadd.f32 %v2053, %v2117
        %2119 = vmatmul.f32.gmra.mxu0 %v1971
        %v2120 = vpop.f32.mrf.mxu0
        %v2121 = vadd.f32 %v2056, %v2120
        %2122 = vmatmul.f32.gmra.mxu0 %v1973
        %v2123 = vpop.f32.mrf.mxu0
        %v2124 = vadd.f32 %v2059, %v2123
        %2125 = vmatmul.f32.gmra.mxu0 %v1975
        %v2126 = vpop.f32.mrf.mxu0
        %v2127 = vadd.f32 %v2062, %v2126
        %2128 = vmatmul.f32.gmra.mxu0 %v1977
        %v2129 = vpop.f32.mrf.mxu0
        %v2130 = vadd.f32 %v2065, %v2129
        %2131 = vmatmul.f32.gmra.mxu0 %v1979
        %v2132 = vpop.f32.mrf.mxu0
        %v2133 = vadd.f32 %v2068, %v2132
        %2134 = vmatmul.f32.gmra.mxu0 %v1981
        %v2135 = vpop.f32.mrf.mxu0
        %v2136 = vadd.f32 %v2071, %v2135
        %2137 = vmatmul.f32.gmra.mxu0 %v1983
        %v2138 = vpop.f32.mrf.mxu0
        %v2139 = vadd.f32 %v2074, %v2138
        %2140 = vmatmul.f32.gmra.mxu0 %v1985
        %v2141 = vpop.f32.mrf.mxu0
        %v2142 = vadd.f32 %v2077, %v2141
        %2143 = vmatmul.f32.gmra.mxu0 %v1987
        %v2144 = vpop.f32.mrf.mxu0
        %v2145 = vadd.f32 %v2080, %v2144
        %2146 = vmatmul.f32.gmra.mxu0 %v1989
        %v2147 = vpop.f32.mrf.mxu0
        %v2148 = vadd.f32 %v2083, %v2147
        %2149 = vmatmul.f32.gmra.mxu0 %v1991
        %v2150 = vpop.f32.mrf.mxu0
        %v2151 = vadd.f32 %v2086, %v2150
        %2152 = vmatmul.f32.gmra.mxu0 %v1993
        %v2153 = vpop.f32.mrf.mxu0
        %v2154 = vadd.f32 %v2089, %v2153
        %2155 = vmatmul.f32.gmra.mxu0 %v1995
        %v2156 = vpop.f32.mrf.mxu0
        %v2157 = vadd.f32 %v2092, %v2156
        %2158 = vdwg.mxu0
        %v2159 = vlaneseq
        %v2160 = vand.u32 %v2159, 127
        %vm2161 = vcmp.ge.s32.totalorder %v2160, 4
        %v2162 = vmax.f32 %v2112, -20.0
        %v2163 = vmax.f32 %v2115, -20.0
        %v2164 = vmax.f32 %v2118, -20.0
        %v2165 = vmax.f32 %v2121, -20.0
        %v2166 = vmax.f32 %v2124, -20.0
        %v2167 = vmax.f32 %v2127, -20.0
        %v2168 = vmax.f32 %v2130, -20.0
        %v2169 = vmax.f32 %v2133, -20.0
        %v2170 = vmax.f32 %v2136, -20.0
        %v2171 = vmax.f32 %v2139, -20.0
        %v2172 = vmax.f32 %v2142, -20.0
        %v2173 = vmax.f32 %v2145, -20.0
        %v2174 = vmax.f32 %v2148, -20.0
        %v2175 = vmax.f32 %v2151, -20.0
        %v2176 = vmax.f32 %v2154, -20.0
        %v2177 = vmax.f32 %v2157, -20.0
        %v2178 = vmin.f32 %v2162, 2.0
        %v2179 = vmin.f32 %v2163, 2.0
        %v2180 = vmin.f32 %v2164, 2.0
        %v2181 = vmin.f32 %v2165, 2.0
        %v2182 = vmin.f32 %v2166, 2.0
        %v2183 = vmin.f32 %v2167, 2.0
        %v2184 = vmin.f32 %v2168, 2.0
        %v2185 = vmin.f32 %v2169, 2.0
        %v2186 = vmin.f32 %v2170, 2.0
        %v2187 = vmin.f32 %v2171, 2.0
        %v2188 = vmin.f32 %v2172, 2.0
        %v2189 = vmin.f32 %v2173, 2.0
        %v2190 = vmin.f32 %v2174, 2.0
        %v2191 = vmin.f32 %v2175, 2.0
        %v2192 = vmin.f32 %v2176, 2.0
        %v2193 = vmin.f32 %v2177, 2.0
        %v2194 = vsel %vm2161, %v2178, %v2112
        %v2195 = vsel %vm2161, %v2179, %v2115
        %v2196 = vsel %vm2161, %v2180, %v2118
        %v2197 = vsel %vm2161, %v2181, %v2121
        %v2198 = vsel %vm2161, %v2182, %v2124
        %v2199 = vsel %vm2161, %v2183, %v2127
        %v2200 = vsel %vm2161, %v2184, %v2130
        %v2201 = vsel %vm2161, %v2185, %v2133
        %v2202 = vsel %vm2161, %v2186, %v2136
        %v2203 = vsel %vm2161, %v2187, %v2139
        %v2204 = vsel %vm2161, %v2188, %v2142
        %v2205 = vsel %vm2161, %v2189, %v2145
        %v2206 = vsel %vm2161, %v2190, %v2148
        %v2207 = vsel %vm2161, %v2191, %v2151
        %v2208 = vsel %vm2161, %v2192, %v2154
        %v2209 = vsel %vm2161, %v2193, %v2157
        %vm2210 = vcmask 64512
        %2211 = vst.msk [vmem:[%s241] sm:$0xff] %vm2210, %v2194
        %2212 = vst.msk [vmem:[%s241 + $0x8] sm:$0xff] %vm2210, %v2195
        %2213 = vst.msk [vmem:[%s241 + $0x10] sm:$0xff] %vm2210, %v2196
        %2214 = vst.msk [vmem:[%s241 + $0x18] sm:$0xff] %vm2210, %v2197
        %2215 = vst.msk [vmem:[%s241 + $0x20] sm:$0xff] %vm2210, %v2198
        %2216 = vst.msk [vmem:[%s241 + $0x28] sm:$0xff] %vm2210, %v2199
        %2217 = vst.msk [vmem:[%s241 + $0x30] sm:$0xff] %vm2210, %v2200
        %2218 = vst.msk [vmem:[%s241 + $0x38] sm:$0xff] %vm2210, %v2201
        %2219 = vst.msk [vmem:[%s241 + $0x40] sm:$0xff] %vm2210, %v2202
        %2220 = vst.msk [vmem:[%s241 + $0x48] sm:$0xff] %vm2210, %v2203
        %2221 = vst.msk [vmem:[%s241 + $0x50] sm:$0xff] %vm2210, %v2204
        %2222 = vst.msk [vmem:[%s241 + $0x58] sm:$0xff] %vm2210, %v2205
        %2223 = vst.msk [vmem:[%s241 + $0x60] sm:$0xff] %vm2210, %v2206
        %2224 = vst.msk [vmem:[%s241 + $0x68] sm:$0xff] %vm2210, %v2207
        %2225 = vst.msk [vmem:[%s241 + $0x70] sm:$0xff] %vm2210, %v2208
        %2226 = vst.msk [vmem:[%s241 + $0x78] sm:$0xff] %vm2210, %v2209
        %s2227 = smul.u32 16, %s17
        %p2228 = scmp.lt.s32.totalorder %s2227, 31
        %s2229 = scalar_select %p2228, %s2227, 31
        %s2230 = smul.addr %s2229, 8
        %s2231 = scalar_lea.vmem %s5, %s2230
        // Predicated region
        $region45: #{tpu_custom_call.1} parent=39 // pred_check
          %p2232 = pneg %p145
        $region46: #{tpu_custom_call.1} parent=39 // pred_check_branch
          %2234 = sbr.rel (%p2232) target = $region48
        $region47: #{tpu_custom_call.1} parent=39 // pred_region
          %s2235 = smul.u32 16, %s17
        $region48: #{tpu_custom_call.1} parent=39 // pred_fallthru
          _
      $region40: #{tpu_custom_call.1} parent=5 // pred_fallthru
        _
      %p2236 = scmp.le.s32.totalorder 2, %s12
      // Predicated region
      $region49: #{tpu_custom_call.1} parent=5 // pred_check
        %p2237 = pneg %p2236
      $region50: #{tpu_custom_call.1} parent=5 // pred_check_branch
        %2239 = sbr.rel (%p2237) target = $region52
      $region51: #{tpu_custom_call.1} parent=5 // pred_region
        %s2240 = ssub.s32 %s12, 2
        // Predicated region
        $region53: #{tpu_custom_call.1} parent=51 // pred_check
          %p2241 = pneg %p151
        $region54: #{tpu_custom_call.1} parent=51 // pred_check_branch
          %2243 = sbr.rel (%p2241) target = $region56
        $region55: #{tpu_custom_call.1} parent=51 // pred_region
          %s2244 = smul.u32 16, %s18
          %p2245 = scmp.lt.s32.totalorder %s2244, 31
          %s2246 = scalar_select %p2245, %s2244, 31
          %s2247 = smul.addr %s2246, 8
          %s2248 = scalar_lea.vmem %s5, %s2247
        $region56: #{tpu_custom_call.1} parent=51 // pred_fallthru
          _
      $region52: #{tpu_custom_call.1} parent=5 // pred_fallthru
        _
    $region6: #{tpu_custom_call.1} parent=1 // loop_footer
      %s16 = sadd.s32 1, %s12
    $region7: #{tpu_custom_call.1} parent=1 // loop_footer_branch
      %11 = sbr.rel target = $region3
    $region8: #{tpu_custom_call.1} parent=1 // loop_exit
      _
    %2249 = vsyncpa [#allocation3], 1
    %s2250 = scalar_lea.sflag [#allocation3], 1
    %2251 = vsyncpa %s2250, 1

</llo_original>
